<compile_context>
chip_gen: v7x
topology: tpu7x:2x2x1
jax: 0.10.0
libtpu: 0.0.40
codegen_flags: <defaults>
</compile_context>

<pallas_src>
import functools

import jax
import jax.numpy as jnp
from jax.experimental import pallas as pl
from jax.experimental.pallas import tpu as pltpu


_LN_EPS = 1e-5                 # PyTorch nn.LayerNorm default
_SQRT_HALF = 0.7071067811865476


# ----------------------------- in-kernel helpers -----------------------------
def _layernorm(x, w, b):
    """LayerNorm over the last axis with fused E[x]/E[x^2] reductions."""
    mu = jnp.mean(x, axis=-1, keepdims=True)
    mu2 = jnp.mean(x * x, axis=-1, keepdims=True)
    var = jnp.maximum(mu2 - mu * mu, 0.0)
    return (x - mu) * jax.lax.rsqrt(var + _LN_EPS) * w + b


def _erf(x):
    # Abramowitz & Stegun 7.1.26 (max abs error ~1.5e-7): matches exact erf to
    # ~f32 precision using only exp / mul / add (safe Mosaic lowering everywhere).
    p = 0.3275911
    a1, a2, a3, a4, a5 = (0.254829592, -0.284496736, 1.421413741,
                          -1.453152027, 1.061405429)
    z = jnp.abs(x)
    t = 1.0 / (1.0 + p * z)
    poly = ((((a5 * t + a4) * t + a3) * t + a2) * t + a1) * t
    y = 1.0 - poly * jnp.exp(-z * z)
    return jnp.where(x >= 0.0, y, -y)


def _gelu(x):
    # nn.GELU() default (exact, erf-based).
    return 0.5 * x * (1.0 + _erf(x * _SQRT_HALF))


# ------------------------------- fused kernel --------------------------------
def _mixer_kernel(patches_ref, ew_ref, eb_ref,
                  ln1w_ref, ln1b_ref, tw1_ref, tb1_ref, tw2_ref, tb2_ref,
                  ln2w_ref, ln2b_ref, cw1_ref, cb1_ref, cw2_ref, cb2_ref,
                  nw_ref, nb_ref, uw_ref, ub_ref,
                  out_ref, x_scratch):
    """One (batch element, layer) grid step."""
    f32 = jnp.float32
    l = pl.program_id(1)
    num_layers = pl.num_programs(1)

    # --- patch embedding (first layer step of each batch element only)
    @pl.when(l == 0)
    def _():
        x_scratch[...] = (jnp.dot(patches_ref[...], ew_ref[...],
                                  preferred_element_type=f32) + eb_ref[...])

    x = x_scratch[...]                                              # (P, C)

    # --- token mixing: LayerNorm over C, MLP over the patch axis
    y = _layernorm(x, ln1w_ref[...], ln1b_ref[...])                 # (P, C)
    h = _gelu(jnp.dot(tw1_ref[...], y,
                      preferred_element_type=f32) + tb1_ref[...])   # (TH, C)
    x = x + (jnp.dot(tw2_ref[...], h,
                     preferred_element_type=f32) + tb2_ref[...])    # (P, C)

    # --- channel mixing: LayerNorm over C, MLP over C
    z = _layernorm(x, ln2w_ref[...], ln2b_ref[...])                 # (P, C)
    h2 = _gelu(jnp.dot(z, cw1_ref[...],
                       preferred_element_type=f32) + cb1_ref[...])  # (P, CH)
    x = x + (jnp.dot(h2, cw2_ref[...],
                     preferred_element_type=f32) + cb2_ref[...])    # (P, C)

    x_scratch[...] = x

    # --- final LayerNorm + un-embed (== ConvTranspose2d k=stride=ps), last layer
    @pl.when(l == num_layers - 1)
    def _():
        yf = _layernorm(x, nw_ref[...], nb_ref[...])
        out_ref[...] = (jnp.dot(yf, uw_ref[...], preferred_element_type=f32)
                        + ub_ref[...]).astype(out_ref.dtype)


# --------------------------------- forward ------------------------------------
@functools.partial(jax.jit, static_argnums=2)
def original_mixer_forward(x, params, patch_size):
    B, Cin, H, W = x.shape
    ps = patch_size
    Hp, Wp = H // ps, W // ps
    P = Hp * Wp
    patch_dim = Cin * ps * ps
    C = params["embed_w"].shape[1]
    L = params["ln1w"].shape[0]
    TH = params["tw1"].shape[1]
    CH = params["cw1"].shape[2]
    out_dim = params["unembed_w"].shape[1]

    # lane-dense output: pad the un-embed dim up to a multiple of 128
    out_pad = max(128, ((out_dim + 127) // 128) * 128)
    uw = jnp.pad(params["unembed_w"], ((0, 0), (0, out_pad - out_dim)))
    ub = jnp.pad(params["unembed_b"], ((0, 0), (0, out_pad - out_dim)))

    # patchify (Conv2d(k=stride=ps) input + 'b c h w -> b (h w) c')
    patches = (x.reshape(B, Cin, Hp, ps, Wp, ps)
                .transpose(0, 2, 4, 1, 3, 5)
                .reshape(B * P, patch_dim))
    # TODO(synk): at large image sizes fold this transpose into the kernel via an
    # (Hp, Wp) BlockSpec index_map instead of a standalone XLA transpose pass.

    operands = (patches,
                params["embed_w"], params["embed_b"],
                params["ln1w"], params["ln1b"],
                params["tw1"], params["tb1"], params["tw2"], params["tb2"],
                params["ln2w"], params["ln2b"],
                params["cw1"], params["cb1"], params["cw2"], params["cb2"],
                params["norm_w"], params["norm_b"],
                uw, ub)

    def _full(shape):
        return pl.BlockSpec(shape, lambda b, l: (0,) * len(shape))

    def _per_layer(shape):
        # stacked (L, ...) weight: squeeze the layer axis, index it with l
        nd = len(shape)
        return pl.BlockSpec((None,) + tuple(shape[1:]),
                            lambda b, l: (l,) + (0,) * (nd - 1))

    in_specs = [
        pl.BlockSpec((P, patch_dim), lambda b, l: (b, 0)),   # patches
        _full((patch_dim, C)),                               # embed_w
        _full((1, C)),                                       # embed_b
        _per_layer((L, 1, C)),                               # ln1w
        _per_layer((L, 1, C)),                               # ln1b
        _per_layer((L, TH, P)),                              # tw1
        _per_layer((L, TH, 1)),                              # tb1
        _per_layer((L, P, TH)),                              # tw2
        _per_layer((L, P, 1)),                               # tb2
        _per_layer((L, 1, C)),                               # ln2w
        _per_layer((L, 1, C)),                               # ln2b
        _per_layer((L, C, CH)),                              # cw1
        _per_layer((L, 1, CH)),                              # cb1
        _per_layer((L, CH, C)),                              # cw2
        _per_layer((L, 1, C)),                               # cb2
        _full((1, C)),                                       # norm_w
        _full((1, C)),                                       # norm_b
        _full((C, out_pad)),                                 # unembed_w (padded)
        _full((1, out_pad)),                                 # unembed_b (padded)
    ]
    out_specs = pl.BlockSpec((P, out_pad), lambda b, l: (b, 0))

    flops = int(2 * B * P * patch_dim * C
                + B * L * (4 * TH * P * C + 4 * P * C * CH)
                + 2 * B * P * C * out_pad)
    transcendentals = int(B * L * (TH * C + P * CH) + B * (2 * L + 1) * P)
    bytes_accessed = int(4 * (sum(op.size for op in operands) + B * P * out_pad))

    out = pl.pallas_call(
        _mixer_kernel,
        out_shape=jax.ShapeDtypeStruct((B * P, out_pad), x.dtype),
        grid_spec=pltpu.PrefetchScalarGridSpec(
            num_scalar_prefetch=0,
            grid=(B, L),
            in_specs=in_specs,
            out_specs=out_specs,
            scratch_shapes=[pltpu.VMEM((P, C), jnp.float32)]),
        compiler_params=pltpu.CompilerParams(
            dimension_semantics=("parallel", "arbitrary"),
            vmem_limit_bytes=48 * 1024 * 1024),
        cost_estimate=pl.CostEstimate(flops=flops,
                                      transcendentals=transcendentals,
                                      bytes_accessed=bytes_accessed),
    )(*operands)

    out = out[:, :out_dim]

    # un-patchify ('b (h w) c -> b c h w' + ConvTranspose2d(k=stride=ps))
    y = (out.reshape(B, Hp, Wp, Cin, ps, ps)
            .transpose(0, 3, 1, 4, 2, 5)
            .reshape(B, Cin, H, W))
    return y


# --------------------------- pure-JAX reference -------------------------------
def original_mixer_reference(x, params, patch_size):
    B, Cin, H, W = x.shape
    ps = patch_size
    Hp, Wp = H // ps, W // ps
    P = Hp * Wp

    patches = (x.reshape(B, Cin, Hp, ps, Wp, ps)
                .transpose(0, 2, 4, 1, 3, 5)
                .reshape(B, P, Cin * ps * ps))
    h = patches @ params["embed_w"] + params["embed_b"]

    def ln(v, w, b):
        mu = v.mean(-1, keepdims=True)
        var = ((v - mu) ** 2).mean(-1, keepdims=True)
        return (v - mu) / jnp.sqrt(var + _LN_EPS) * w + b

    L = params["ln1w"].shape[0]
    for l in range(L):
        y = ln(h, params["ln1w"][l], params["ln1b"][l])
        t = jnp.einsum("tp,bpc->btc", params["tw1"][l], y) + params["tb1"][l]
        t = jax.nn.gelu(t, approximate=False)
        t = jnp.einsum("pt,btc->bpc", params["tw2"][l], t) + params["tb2"][l]
        h = h + t
        z = ln(h, params["ln2w"][l], params["ln2b"][l])
        z2 = jax.nn.gelu(z @ params["cw1"][l] + params["cb1"][l],
                         approximate=False)
        h = h + z2 @ params["cw2"][l] + params["cb2"][l]

    h = ln(h, params["norm_w"], params["norm_b"])
    out = h @ params["unembed_w"] + params["unembed_b"]
    return (out.reshape(B, Hp, Wp, Cin, ps, ps)
               .transpose(0, 3, 1, 4, 2, 5)
               .reshape(B, Cin, H, W))


# ------------------------------ parameter setup -------------------------------
def init_params(key, image_size, channels, patch_size, num_layers,
                hidden_dim, tokens_hidden_dim, channels_hidden_dim):
    ps = patch_size
    P = (image_size // ps) ** 2
    C, TH, CH = hidden_dim, tokens_hidden_dim, channels_hidden_dim
    L = num_layers
    f32 = jnp.float32

    keys = jax.random.split(key, 12)

    def rnd(k, shape):
        return jax.random.normal(k, shape, f32) * 0.02

    params = {
        # Conv2d weight (hidden, Cin, ps, ps) flattened (Cin, i, j)-major -> (Cin*ps*ps, hidden)
        "embed_w": rnd(keys[0], (channels * ps * ps, C)),
        "embed_b": rnd(keys[1], (1, C)),
        # ---- stacked per-layer mixer weights (leading layer axis L) ----
        "ln1w": jnp.ones((L, 1, C), f32),
        "ln1b": jnp.zeros((L, 1, C), f32),
        "tw1": rnd(keys[2], (L, TH, P)),   # token Linear1, PyTorch (out=TH, in=P)
        "tb1": rnd(keys[3], (L, TH, 1)),   # bias as column -> broadcasts onto (TH, C)
        "tw2": rnd(keys[4], (L, P, TH)),   # token Linear2, PyTorch (out=P, in=TH)
        "tb2": rnd(keys[5], (L, P, 1)),    # bias as column -> broadcasts onto (P, C)
        "ln2w": jnp.ones((L, 1, C), f32),
        "ln2b": jnp.zeros((L, 1, C), f32),
        "cw1": rnd(keys[6], (L, C, CH)),   # channel Linear1, stored (in, out)
        "cb1": rnd(keys[7], (L, 1, CH)),
        "cw2": rnd(keys[8], (L, CH, C)),   # channel Linear2, stored (in, out)
        "cb2": rnd(keys[9], (L, 1, C)),
        # ---- head ----
        "norm_w": jnp.ones((1, C), f32),
        "norm_b": jnp.zeros((1, C), f32),
        # ConvTranspose2d weight (hidden, Cout, ps, ps) flattened (Cout, i, j)-major
        "unembed_w": rnd(keys[10], (C, channels * ps * ps)),
    }
    ct_bias = jax.random.normal(keys[11], (channels,), f32) * 0.02
    # per-output-channel bias broadcast over the (i, j) positions of each patch
    params["unembed_b"] = jnp.repeat(ct_bias, ps * ps).reshape(1, channels * ps * ps)
    return params


# ----------------------------------- main --------------------------------------
if __name__ == "__main__":
    # small shapes consistent with the module's constructor
    image_size = 16
    channels = 3
    patch_size = 4
    num_layers = 2
    hidden_dim = 32
    tokens_hidden_dim = 16
    channels_hidden_dim = 64

    key = jax.random.PRNGKey(0)
    kp, kx = jax.random.split(key)
    params = init_params(kp, image_size, channels, patch_size, num_layers,
                         hidden_dim, tokens_hidden_dim, channels_hidden_dim)

    x = jax.random.normal(kx, (2, channels, image_size, image_size),
                          dtype=jnp.float32)

    out = original_mixer_forward(x, params, patch_size)
    out = jax.block_until_ready(out)
    assert out.shape == (2, channels, image_size, image_size), out.shape
    assert bool(jnp.all(jnp.isfinite(out)))

    ref = original_mixer_reference(x, params, patch_size)
    err = float(jnp.max(jnp.abs(out - ref)))
    assert err < 1e-3, f"max abs error vs reference: {err}"

    print("KERNEL_OK")
</pallas_src>

<mosaic_0001>
module attributes {stable_mosaic.version = 11 : i64} {
  func.func @_mixer_kernel(%arg0: i32, %arg1: i32, %arg2: memref<16x48xf32, #tpu.memory_space<vmem>>, %arg3: memref<48x32xf32, #tpu.memory_space<vmem>>, %arg4: memref<1x32xf32, #tpu.memory_space<vmem>>, %arg5: memref<1x1x32xf32, #tpu.memory_space<vmem>>, %arg6: memref<1x1x32xf32, #tpu.memory_space<vmem>>, %arg7: memref<1x16x16xf32, #tpu.memory_space<vmem>>, %arg8: memref<1x16x1xf32, #tpu.memory_space<vmem>>, %arg9: memref<1x16x16xf32, #tpu.memory_space<vmem>>, %arg10: memref<1x16x1xf32, #tpu.memory_space<vmem>>, %arg11: memref<1x1x32xf32, #tpu.memory_space<vmem>>, %arg12: memref<1x1x32xf32, #tpu.memory_space<vmem>>, %arg13: memref<1x32x64xf32, #tpu.memory_space<vmem>>, %arg14: memref<1x1x64xf32, #tpu.memory_space<vmem>>, %arg15: memref<1x64x32xf32, #tpu.memory_space<vmem>>, %arg16: memref<1x1x32xf32, #tpu.memory_space<vmem>>, %arg17: memref<1x32xf32, #tpu.memory_space<vmem>>, %arg18: memref<1x32xf32, #tpu.memory_space<vmem>>, %arg19: memref<32x128xf32, #tpu.memory_space<vmem>>, %arg20: memref<1x128xf32, #tpu.memory_space<vmem>>, %arg21: memref<16x128xf32, #tpu.memory_space<vmem>>, %arg22: memref<16x32xf32, #tpu.memory_space<vmem>>) attributes {dimension_semantics = [#tpu.dimension_semantics<parallel>, #tpu.dimension_semantics<arbitrary>], iteration_bounds = array<i64: 2, 2>, scalar_prefetch = 0 : i64, scratch_operands = 1 : i64, tpu.core_type = #tpu.core_type<tc>, window_params = [{transform_indices = @transform_0, window_bounds = array<i64: 16, 48>}, {pipeline_mode = #tpu.pipeline_mode<synchronous>, transform_indices = @transform_1, window_bounds = array<i64: 48, 32>}, {pipeline_mode = #tpu.pipeline_mode<synchronous>, transform_indices = @transform_2, window_bounds = array<i64: 1, 32>}, {transform_indices = @transform_3, window_bounds = array<i64: 1, 1, 32>}, {transform_indices = @transform_4, window_bounds = array<i64: 1, 1, 32>}, {transform_indices = @transform_5, window_bounds = array<i64: 1, 16, 16>}, {transform_indices = @transform_6, window_bounds = array<i64: 1, 16, 1>}, {transform_indices = @transform_7, window_bounds = array<i64: 1, 16, 16>}, {transform_indices = @transform_8, window_bounds = array<i64: 1, 16, 1>}, {transform_indices = @transform_9, window_bounds = array<i64: 1, 1, 32>}, {transform_indices = @transform_10, window_bounds = array<i64: 1, 1, 32>}, {transform_indices = @transform_11, window_bounds = array<i64: 1, 32, 64>}, {transform_indices = @transform_12, window_bounds = array<i64: 1, 1, 64>}, {transform_indices = @transform_13, window_bounds = array<i64: 1, 64, 32>}, {transform_indices = @transform_14, window_bounds = array<i64: 1, 1, 32>}, {pipeline_mode = #tpu.pipeline_mode<synchronous>, transform_indices = @transform_15, window_bounds = array<i64: 1, 32>}, {pipeline_mode = #tpu.pipeline_mode<synchronous>, transform_indices = @transform_16, window_bounds = array<i64: 1, 32>}, {pipeline_mode = #tpu.pipeline_mode<synchronous>, transform_indices = @transform_17, window_bounds = array<i64: 32, 128>}, {pipeline_mode = #tpu.pipeline_mode<synchronous>, transform_indices = @transform_18, window_bounds = array<i64: 1, 128>}, {transform_indices = @transform_19, window_bounds = array<i64: 16, 128>}]} {
    %c0_i32 = arith.constant 0 : i32
    %0 = arith.cmpi eq, %arg1, %c0_i32 : i32
    %1 = arith.extui %0 : i1 to i32
    %c0_i32_0 = arith.constant 0 : i32
    %2 = arith.cmpi ne, %1, %c0_i32_0 : i32
    scf.if %2 {
      %c0_86 = arith.constant 0 : index
      %c0_87 = arith.constant 0 : index
      %174 = vector.load %arg2[%c0_86, %c0_87] : memref<16x48xf32, #tpu.memory_space<vmem>>, vector<16x48xf32>
      %c0_88 = arith.constant 0 : index
      %c0_89 = arith.constant 0 : index
      %175 = vector.load %arg3[%c0_88, %c0_89] : memref<48x32xf32, #tpu.memory_space<vmem>>, vector<48x32xf32>
      %cst_90 = arith.constant dense<0.000000e+00> : vector<16x32xf32>
      %176 = tpu.matmul %174, %175, %cst_90 {dimension_numbers = #tpu.dot_dimension_numbers<[1], [0], [0], [1], [0, 0, 1, 1], [], []>} : vector<16x48xf32>, vector<48x32xf32>, vector<16x32xf32> -> vector<16x32xf32>
      %c0_91 = arith.constant 0 : index
      %c0_92 = arith.constant 0 : index
      %177 = vector.load %arg4[%c0_91, %c0_92] : memref<1x32xf32, #tpu.memory_space<vmem>>, vector<1x32xf32>
      %178 = vector.broadcast %177 : vector<1x32xf32> to vector<16x32xf32>
      %179 = arith.addf %176, %178 : vector<16x32xf32>
      %c0_93 = arith.constant 0 : index
      %c0_94 = arith.constant 0 : index
      %180 = vector.load %arg22[%c0_93, %c0_94] : memref<16x32xf32, #tpu.memory_space<vmem>>, vector<16x32xf32>
      tpu.vector_store %arg22[%c0_93, %c0_94], %179 {strides = array<i32>} : memref<16x32xf32, #tpu.memory_space<vmem>>, vector<16x32xf32>,
    } else {
    }
    %c0 = arith.constant 0 : index
    %c0_1 = arith.constant 0 : index
    %3 = vector.load %arg22[%c0, %c0_1] : memref<16x32xf32, #tpu.memory_space<vmem>>, vector<16x32xf32>
    %c0_2 = arith.constant 0 : index
    %c0_3 = arith.constant 0 : index
    %c0_4 = arith.constant 0 : index
    %4 = vector.load %arg5[%c0_2, %c0_3, %c0_4] : memref<1x1x32xf32, #tpu.memory_space<vmem>>, vector<1x1x32xf32>
    %5 = vector.shape_cast %4 : vector<1x1x32xf32> to vector<1x32xf32>
    %c0_5 = arith.constant 0 : index
    %c0_6 = arith.constant 0 : index
    %c0_7 = arith.constant 0 : index
    %6 = vector.load %arg6[%c0_5, %c0_6, %c0_7] : memref<1x1x32xf32, #tpu.memory_space<vmem>>, vector<1x1x32xf32>
    %7 = vector.shape_cast %6 : vector<1x1x32xf32> to vector<1x32xf32>
    %cst = arith.constant dense<0.000000e+00> : vector<16xf32>
    %8 = vector.multi_reduction <add>, %3, %cst [1] : vector<16x32xf32> to vector<16xf32>
    %9 = vector.shape_cast %8 : vector<16xf32> to vector<16x1xf32>
    %cst_8 = arith.constant 3.200000e+01 : f32
    %10 = vector.broadcast %cst_8 : f32 to vector<16x1xf32>
    %11 = arith.divf %9, %10 : vector<16x1xf32>
    %12 = arith.mulf %3, %3 : vector<16x32xf32>
    %cst_9 = arith.constant dense<0.000000e+00> : vector<16xf32>
    %13 = vector.multi_reduction <add>, %12, %cst_9 [1] : vector<16x32xf32> to vector<16xf32>
    %14 = vector.shape_cast %13 : vector<16xf32> to vector<16x1xf32>
    %cst_10 = arith.constant 3.200000e+01 : f32
    %15 = vector.broadcast %cst_10 : f32 to vector<16x1xf32>
    %16 = arith.divf %14, %15 : vector<16x1xf32>
    %17 = arith.mulf %11, %11 : vector<16x1xf32>
    %18 = arith.subf %16, %17 : vector<16x1xf32>
    %cst_11 = arith.constant 0.000000e+00 : f32
    %19 = vector.broadcast %cst_11 : f32 to vector<16x1xf32>
    %20 = arith.maximumf %18, %19 : vector<16x1xf32>
    %21 = vector.broadcast %11 : vector<16x1xf32> to vector<16x32xf32>
    %22 = arith.subf %3, %21 : vector<16x32xf32>
    %cst_12 = arith.constant 9.99999974E-6 : f32
    %23 = vector.broadcast %cst_12 : f32 to vector<16x1xf32>
    %24 = arith.addf %20, %23 : vector<16x1xf32>
    %25 = math.rsqrt %24 : vector<16x1xf32>
    %26 = vector.broadcast %25 : vector<16x1xf32> to vector<16x32xf32>
    %27 = arith.mulf %22, %26 : vector<16x32xf32>
    %28 = vector.broadcast %5 : vector<1x32xf32> to vector<16x32xf32>
    %29 = arith.mulf %27, %28 : vector<16x32xf32>
    %30 = vector.broadcast %7 : vector<1x32xf32> to vector<16x32xf32>
    %31 = arith.addf %29, %30 : vector<16x32xf32>
    %c0_13 = arith.constant 0 : index
    %c0_14 = arith.constant 0 : index
    %c0_15 = arith.constant 0 : index
    %32 = vector.load %arg7[%c0_13, %c0_14, %c0_15] : memref<1x16x16xf32, #tpu.memory_space<vmem>>, vector<1x16x16xf32>
    %33 = vector.shape_cast %32 : vector<1x16x16xf32> to vector<16x16xf32>
    %cst_16 = arith.constant dense<0.000000e+00> : vector<16x32xf32>
    %34 = tpu.matmul %33, %31, %cst_16 {dimension_numbers = #tpu.dot_dimension_numbers<[1], [0], [0], [1], [0, 0, 1, 1], [], []>} : vector<16x16xf32>, vector<16x32xf32>, vector<16x32xf32> -> vector<16x32xf32>
    %c0_17 = arith.constant 0 : index
    %c0_18 = arith.constant 0 : index
    %c0_19 = arith.constant 0 : index
    %35 = vector.load %arg8[%c0_17, %c0_18, %c0_19] : memref<1x16x1xf32, #tpu.memory_space<vmem>>, vector<1x16x1xf32>
    %36 = vector.shape_cast %35 : vector<1x16x1xf32> to vector<16x1xf32>
    %37 = vector.broadcast %36 : vector<16x1xf32> to vector<16x32xf32>
    %38 = arith.addf %34, %37 : vector<16x32xf32>
    %cst_20 = arith.constant 5.000000e-01 : f32
    %39 = vector.broadcast %cst_20 : f32 to vector<16x32xf32>
    %40 = arith.mulf %39, %38 : vector<16x32xf32>
    %cst_21 = arith.constant 0.707106769 : f32
    %41 = vector.broadcast %cst_21 : f32 to vector<16x32xf32>
    %42 = arith.mulf %38, %41 : vector<16x32xf32>
    %43 = math.absf %42 : vector<16x32xf32>
    %cst_22 = arith.constant 0.327591091 : f32
    %44 = vector.broadcast %cst_22 : f32 to vector<16x32xf32>
    %45 = arith.mulf %44, %43 : vector<16x32xf32>
    %cst_23 = arith.constant 1.000000e+00 : f32
    %46 = vector.broadcast %cst_23 : f32 to vector<16x32xf32>
    %47 = arith.addf %46, %45 : vector<16x32xf32>
    %cst_24 = arith.constant 1.000000e+00 : f32
    %48 = vector.broadcast %cst_24 : f32 to vector<16x32xf32>
    %49 = arith.divf %48, %47 : vector<16x32xf32>
    %cst_25 = arith.constant 1.06140542 : f32
    %50 = vector.broadcast %cst_25 : f32 to vector<16x32xf32>
    %51 = arith.mulf %50, %49 : vector<16x32xf32>
    %cst_26 = arith.constant -1.45315206 : f32
    %52 = vector.broadcast %cst_26 : f32 to vector<16x32xf32>
    %53 = arith.addf %51, %52 : vector<16x32xf32>
    %54 = arith.mulf %53, %49 : vector<16x32xf32>
    %cst_27 = arith.constant 1.42141378 : f32
    %55 = vector.broadcast %cst_27 : f32 to vector<16x32xf32>
    %56 = arith.addf %54, %55 : vector<16x32xf32>
    %57 = arith.mulf %56, %49 : vector<16x32xf32>
    %cst_28 = arith.constant -0.284496725 : f32
    %58 = vector.broadcast %cst_28 : f32 to vector<16x32xf32>
    %59 = arith.addf %57, %58 : vector<16x32xf32>
    %60 = arith.mulf %59, %49 : vector<16x32xf32>
    %cst_29 = arith.constant 0.254829586 : f32
    %61 = vector.broadcast %cst_29 : f32 to vector<16x32xf32>
    %62 = arith.addf %60, %61 : vector<16x32xf32>
    %63 = arith.mulf %62, %49 : vector<16x32xf32>
    %cst_30 = arith.constant 0.000000e+00 : f32
    %64 = vector.broadcast %cst_30 : f32 to vector<16x32xf32>
    %65 = arith.subf %64, %43 : vector<16x32xf32>
    %66 = arith.mulf %65, %43 : vector<16x32xf32>
    %67 = math.exp %66 : vector<16x32xf32>
    %68 = arith.mulf %63, %67 : vector<16x32xf32>
    %cst_31 = arith.constant 1.000000e+00 : f32
    %69 = vector.broadcast %cst_31 : f32 to vector<16x32xf32>
    %70 = arith.subf %69, %68 : vector<16x32xf32>
    %cst_32 = arith.constant 0.000000e+00 : f32
    %71 = vector.broadcast %cst_32 : f32 to vector<16x32xf32>
    %72 = arith.cmpf oge, %42, %71 : vector<16x32xf32>
    %cst_33 = arith.constant 0.000000e+00 : f32
    %73 = vector.broadcast %cst_33 : f32 to vector<16x32xf32>
    %74 = arith.subf %73, %70 : vector<16x32xf32>
    %75 = arith.select %72, %70, %74 : vector<16x32xi1>, vector<16x32xf32>
    %cst_34 = arith.constant 1.000000e+00 : f32
    %76 = vector.broadcast %cst_34 : f32 to vector<16x32xf32>
    %77 = arith.addf %76, %75 : vector<16x32xf32>
    %78 = arith.mulf %40, %77 : vector<16x32xf32>
    %c0_35 = arith.constant 0 : index
    %c0_36 = arith.constant 0 : index
    %c0_37 = arith.constant 0 : index
    %79 = vector.load %arg9[%c0_35, %c0_36, %c0_37] : memref<1x16x16xf32, #tpu.memory_space<vmem>>, vector<1x16x16xf32>
    %80 = vector.shape_cast %79 : vector<1x16x16xf32> to vector<16x16xf32>
    %cst_38 = arith.constant dense<0.000000e+00> : vector<16x32xf32>
    %81 = tpu.matmul %80, %78, %cst_38 {dimension_numbers = #tpu.dot_dimension_numbers<[1], [0], [0], [1], [0, 0, 1, 1], [], []>} : vector<16x16xf32>, vector<16x32xf32>, vector<16x32xf32> -> vector<16x32xf32>
    %c0_39 = arith.constant 0 : index
    %c0_40 = arith.constant 0 : index
    %c0_41 = arith.constant 0 : index
    %82 = vector.load %arg10[%c0_39, %c0_40, %c0_41] : memref<1x16x1xf32, #tpu.memory_space<vmem>>, vector<1x16x1xf32>
    %83 = vector.shape_cast %82 : vector<1x16x1xf32> to vector<16x1xf32>
    %84 = vector.broadcast %83 : vector<16x1xf32> to vector<16x32xf32>
    %85 = arith.addf %81, %84 : vector<16x32xf32>
    %86 = arith.addf %3, %85 : vector<16x32xf32>
    %c0_42 = arith.constant 0 : index
    %c0_43 = arith.constant 0 : index
    %c0_44 = arith.constant 0 : index
    %87 = vector.load %arg11[%c0_42, %c0_43, %c0_44] : memref<1x1x32xf32, #tpu.memory_space<vmem>>, vector<1x1x32xf32>
    %88 = vector.shape_cast %87 : vector<1x1x32xf32> to vector<1x32xf32>
    %c0_45 = arith.constant 0 : index
    %c0_46 = arith.constant 0 : index
    %c0_47 = arith.constant 0 : index
    %89 = vector.load %arg12[%c0_45, %c0_46, %c0_47] : memref<1x1x32xf32, #tpu.memory_space<vmem>>, vector<1x1x32xf32>
    %90 = vector.shape_cast %89 : vector<1x1x32xf32> to vector<1x32xf32>
    %cst_48 = arith.constant dense<0.000000e+00> : vector<16xf32>
    %91 = vector.multi_reduction <add>, %86, %cst_48 [1] : vector<16x32xf32> to vector<16xf32>
    %92 = vector.shape_cast %91 : vector<16xf32> to vector<16x1xf32>
    %cst_49 = arith.constant 3.200000e+01 : f32
    %93 = vector.broadcast %cst_49 : f32 to vector<16x1xf32>
    %94 = arith.divf %92, %93 : vector<16x1xf32>
    %95 = arith.mulf %86, %86 : vector<16x32xf32>
    %cst_50 = arith.constant dense<0.000000e+00> : vector<16xf32>
    %96 = vector.multi_reduction <add>, %95, %cst_50 [1] : vector<16x32xf32> to vector<16xf32>
    %97 = vector.shape_cast %96 : vector<16xf32> to vector<16x1xf32>
    %cst_51 = arith.constant 3.200000e+01 : f32
    %98 = vector.broadcast %cst_51 : f32 to vector<16x1xf32>
    %99 = arith.divf %97, %98 : vector<16x1xf32>
    %100 = arith.mulf %94, %94 : vector<16x1xf32>
    %101 = arith.subf %99, %100 : vector<16x1xf32>
    %cst_52 = arith.constant 0.000000e+00 : f32
    %102 = vector.broadcast %cst_52 : f32 to vector<16x1xf32>
    %103 = arith.maximumf %101, %102 : vector<16x1xf32>
    %104 = vector.broadcast %94 : vector<16x1xf32> to vector<16x32xf32>
    %105 = arith.subf %86, %104 : vector<16x32xf32>
    %cst_53 = arith.constant 9.99999974E-6 : f32
    %106 = vector.broadcast %cst_53 : f32 to vector<16x1xf32>
    %107 = arith.addf %103, %106 : vector<16x1xf32>
    %108 = math.rsqrt %107 : vector<16x1xf32>
    %109 = vector.broadcast %108 : vector<16x1xf32> to vector<16x32xf32>
    %110 = arith.mulf %105, %109 : vector<16x32xf32>
    %111 = vector.broadcast %88 : vector<1x32xf32> to vector<16x32xf32>
    %112 = arith.mulf %110, %111 : vector<16x32xf32>
    %113 = vector.broadcast %90 : vector<1x32xf32> to vector<16x32xf32>
    %114 = arith.addf %112, %113 : vector<16x32xf32>
    %c0_54 = arith.constant 0 : index
    %c0_55 = arith.constant 0 : index
    %c0_56 = arith.constant 0 : index
    %115 = vector.load %arg13[%c0_54, %c0_55, %c0_56] : memref<1x32x64xf32, #tpu.memory_space<vmem>>, vector<1x32x64xf32>
    %116 = vector.shape_cast %115 : vector<1x32x64xf32> to vector<32x64xf32>
    %cst_57 = arith.constant dense<0.000000e+00> : vector<16x64xf32>
    %117 = tpu.matmul %114, %116, %cst_57 {dimension_numbers = #tpu.dot_dimension_numbers<[1], [0], [0], [1], [0, 0, 1, 1], [], []>} : vector<16x32xf32>, vector<32x64xf32>, vector<16x64xf32> -> vector<16x64xf32>
    %c0_58 = arith.constant 0 : index
    %c0_59 = arith.constant 0 : index
    %c0_60 = arith.constant 0 : index
    %118 = vector.load %arg14[%c0_58, %c0_59, %c0_60] : memref<1x1x64xf32, #tpu.memory_space<vmem>>, vector<1x1x64xf32>
    %119 = vector.shape_cast %118 : vector<1x1x64xf32> to vector<1x64xf32>
    %120 = vector.broadcast %119 : vector<1x64xf32> to vector<16x64xf32>
    %121 = arith.addf %117, %120 : vector<16x64xf32>
    %cst_61 = arith.constant 5.000000e-01 : f32
    %122 = vector.broadcast %cst_61 : f32 to vector<16x64xf32>
    %123 = arith.mulf %122, %121 : vector<16x64xf32>
    %cst_62 = arith.constant 0.707106769 : f32
    %124 = vector.broadcast %cst_62 : f32 to vector<16x64xf32>
    %125 = arith.mulf %121, %124 : vector<16x64xf32>
    %126 = math.absf %125 : vector<16x64xf32>
    %cst_63 = arith.constant 0.327591091 : f32
    %127 = vector.broadcast %cst_63 : f32 to vector<16x64xf32>
    %128 = arith.mulf %127, %126 : vector<16x64xf32>
    %cst_64 = arith.constant 1.000000e+00 : f32
    %129 = vector.broadcast %cst_64 : f32 to vector<16x64xf32>
    %130 = arith.addf %129, %128 : vector<16x64xf32>
    %cst_65 = arith.constant 1.000000e+00 : f32
    %131 = vector.broadcast %cst_65 : f32 to vector<16x64xf32>
    %132 = arith.divf %131, %130 : vector<16x64xf32>
    %cst_66 = arith.constant 1.06140542 : f32
    %133 = vector.broadcast %cst_66 : f32 to vector<16x64xf32>
    %134 = arith.mulf %133, %132 : vector<16x64xf32>
    %cst_67 = arith.constant -1.45315206 : f32
    %135 = vector.broadcast %cst_67 : f32 to vector<16x64xf32>
    %136 = arith.addf %134, %135 : vector<16x64xf32>
    %137 = arith.mulf %136, %132 : vector<16x64xf32>
    %cst_68 = arith.constant 1.42141378 : f32
    %138 = vector.broadcast %cst_68 : f32 to vector<16x64xf32>
    %139 = arith.addf %137, %138 : vector<16x64xf32>
    %140 = arith.mulf %139, %132 : vector<16x64xf32>
    %cst_69 = arith.constant -0.284496725 : f32
    %141 = vector.broadcast %cst_69 : f32 to vector<16x64xf32>
    %142 = arith.addf %140, %141 : vector<16x64xf32>
    %143 = arith.mulf %142, %132 : vector<16x64xf32>
    %cst_70 = arith.constant 0.254829586 : f32
    %144 = vector.broadcast %cst_70 : f32 to vector<16x64xf32>
    %145 = arith.addf %143, %144 : vector<16x64xf32>
    %146 = arith.mulf %145, %132 : vector<16x64xf32>
    %cst_71 = arith.constant 0.000000e+00 : f32
    %147 = vector.broadcast %cst_71 : f32 to vector<16x64xf32>
    %148 = arith.subf %147, %126 : vector<16x64xf32>
    %149 = arith.mulf %148, %126 : vector<16x64xf32>
    %150 = math.exp %149 : vector<16x64xf32>
    %151 = arith.mulf %146, %150 : vector<16x64xf32>
    %cst_72 = arith.constant 1.000000e+00 : f32
    %152 = vector.broadcast %cst_72 : f32 to vector<16x64xf32>
    %153 = arith.subf %152, %151 : vector<16x64xf32>
    %cst_73 = arith.constant 0.000000e+00 : f32
    %154 = vector.broadcast %cst_73 : f32 to vector<16x64xf32>
    %155 = arith.cmpf oge, %125, %154 : vector<16x64xf32>
    %cst_74 = arith.constant 0.000000e+00 : f32
    %156 = vector.broadcast %cst_74 : f32 to vector<16x64xf32>
    %157 = arith.subf %156, %153 : vector<16x64xf32>
    %158 = arith.select %155, %153, %157 : vector<16x64xi1>, vector<16x64xf32>
    %cst_75 = arith.constant 1.000000e+00 : f32
    %159 = vector.broadcast %cst_75 : f32 to vector<16x64xf32>
    %160 = arith.addf %159, %158 : vector<16x64xf32>
    %161 = arith.mulf %123, %160 : vector<16x64xf32>
    %c0_76 = arith.constant 0 : index
    %c0_77 = arith.constant 0 : index
    %c0_78 = arith.constant 0 : index
    %162 = vector.load %arg15[%c0_76, %c0_77, %c0_78] : memref<1x64x32xf32, #tpu.memory_space<vmem>>, vector<1x64x32xf32>
    %163 = vector.shape_cast %162 : vector<1x64x32xf32> to vector<64x32xf32>
    %cst_79 = arith.constant dense<0.000000e+00> : vector<16x32xf32>
    %164 = tpu.matmul %161, %163, %cst_79 {dimension_numbers = #tpu.dot_dimension_numbers<[1], [0], [0], [1], [0, 0, 1, 1], [], []>} : vector<16x64xf32>, vector<64x32xf32>, vector<16x32xf32> -> vector<16x32xf32>
    %c0_80 = arith.constant 0 : index
    %c0_81 = arith.constant 0 : index
    %c0_82 = arith.constant 0 : index
    %165 = vector.load %arg16[%c0_80, %c0_81, %c0_82] : memref<1x1x32xf32, #tpu.memory_space<vmem>>, vector<1x1x32xf32>
    %166 = vector.shape_cast %165 : vector<1x1x32xf32> to vector<1x32xf32>
    %167 = vector.broadcast %166 : vector<1x32xf32> to vector<16x32xf32>
    %168 = arith.addf %164, %167 : vector<16x32xf32>
    %169 = arith.addf %86, %168 : vector<16x32xf32>
    %c0_83 = arith.constant 0 : index
    %c0_84 = arith.constant 0 : index
    %170 = vector.load %arg22[%c0_83, %c0_84] : memref<16x32xf32, #tpu.memory_space<vmem>>, vector<16x32xf32>
    tpu.vector_store %arg22[%c0_83, %c0_84], %169 {strides = array<i32>} : memref<16x32xf32, #tpu.memory_space<vmem>>, vector<16x32xf32>,
    %c1_i32 = arith.constant 1 : i32
    %171 = arith.cmpi eq, %arg1, %c1_i32 : i32
    %172 = arith.extui %171 : i1 to i32
    %c0_i32_85 = arith.constant 0 : i32
    %173 = arith.cmpi ne, %172, %c0_i32_85 : i32
    scf.if %173 {
      %c0_86 = arith.constant 0 : index
      %c0_87 = arith.constant 0 : index
      %174 = vector.load %arg17[%c0_86, %c0_87] : memref<1x32xf32, #tpu.memory_space<vmem>>, vector<1x32xf32>
      %c0_88 = arith.constant 0 : index
      %c0_89 = arith.constant 0 : index
      %175 = vector.load %arg18[%c0_88, %c0_89] : memref<1x32xf32, #tpu.memory_space<vmem>>, vector<1x32xf32>
      %cst_90 = arith.constant dense<0.000000e+00> : vector<16xf32>
      %176 = vector.multi_reduction <add>, %169, %cst_90 [1] : vector<16x32xf32> to vector<16xf32>
      %177 = vector.shape_cast %176 : vector<16xf32> to vector<16x1xf32>
      %cst_91 = arith.constant 3.200000e+01 : f32
      %178 = vector.broadcast %cst_91 : f32 to vector<16x1xf32>
      %179 = arith.divf %177, %178 : vector<16x1xf32>
      %180 = arith.mulf %169, %169 : vector<16x32xf32>
      %cst_92 = arith.constant dense<0.000000e+00> : vector<16xf32>
      %181 = vector.multi_reduction <add>, %180, %cst_92 [1] : vector<16x32xf32> to vector<16xf32>
      %182 = vector.shape_cast %181 : vector<16xf32> to vector<16x1xf32>
      %cst_93 = arith.constant 3.200000e+01 : f32
      %183 = vector.broadcast %cst_93 : f32 to vector<16x1xf32>
      %184 = arith.divf %182, %183 : vector<16x1xf32>
      %185 = arith.mulf %179, %179 : vector<16x1xf32>
      %186 = arith.subf %184, %185 : vector<16x1xf32>
      %cst_94 = arith.constant 0.000000e+00 : f32
      %187 = vector.broadcast %cst_94 : f32 to vector<16x1xf32>
      %188 = arith.maximumf %186, %187 : vector<16x1xf32>
      %189 = vector.broadcast %179 : vector<16x1xf32> to vector<16x32xf32>
      %190 = arith.subf %169, %189 : vector<16x32xf32>
      %cst_95 = arith.constant 9.99999974E-6 : f32
      %191 = vector.broadcast %cst_95 : f32 to vector<16x1xf32>
      %192 = arith.addf %188, %191 : vector<16x1xf32>
      %193 = math.rsqrt %192 : vector<16x1xf32>
      %194 = vector.broadcast %193 : vector<16x1xf32> to vector<16x32xf32>
      %195 = arith.mulf %190, %194 : vector<16x32xf32>
      %196 = vector.broadcast %174 : vector<1x32xf32> to vector<16x32xf32>
      %197 = arith.mulf %195, %196 : vector<16x32xf32>
      %198 = vector.broadcast %175 : vector<1x32xf32> to vector<16x32xf32>
      %199 = arith.addf %197, %198 : vector<16x32xf32>
      %c0_96 = arith.constant 0 : index
      %c0_97 = arith.constant 0 : index
      %200 = vector.load %arg19[%c0_96, %c0_97] : memref<32x128xf32, #tpu.memory_space<vmem>>, vector<32x128xf32>
      %cst_98 = arith.constant dense<0.000000e+00> : vector<16x128xf32>
      %201 = tpu.matmul %199, %200, %cst_98 {dimension_numbers = #tpu.dot_dimension_numbers<[1], [0], [0], [1], [0, 0, 1, 1], [], []>} : vector<16x32xf32>, vector<32x128xf32>, vector<16x128xf32> -> vector<16x128xf32>
      %c0_99 = arith.constant 0 : index
      %c0_100 = arith.constant 0 : index
      %202 = vector.load %arg20[%c0_99, %c0_100] : memref<1x128xf32, #tpu.memory_space<vmem>>, vector<1x128xf32>
      %203 = vector.broadcast %202 : vector<1x128xf32> to vector<16x128xf32>
      %204 = arith.addf %201, %203 : vector<16x128xf32>
      %c0_101 = arith.constant 0 : index
      %c0_102 = arith.constant 0 : index
      %205 = vector.load %arg21[%c0_101, %c0_102] : memref<16x128xf32, #tpu.memory_space<vmem>>, vector<16x128xf32>
      tpu.vector_store %arg21[%c0_101, %c0_102], %204 {strides = array<i32>} : memref<16x128xf32, #tpu.memory_space<vmem>>, vector<16x128xf32>,
    } else {
    }
    return
  }
  func.func @transform_0(%arg0: i32, %arg1: i32) -> (i32, i32) {
    %c0_i32 = arith.constant 0 : i32
    %c0_i32_0 = arith.constant 0 : i32
    return %arg0, %c0_i32 : i32, i32
  }
  func.func @transform_1(%arg0: i32, %arg1: i32) -> (i32, i32) {
    %c0_i32 = arith.constant 0 : i32
    %c0_i32_0 = arith.constant 0 : i32
    %c0_i32_1 = arith.constant 0 : i32
    return %c0_i32, %c0_i32_0 : i32, i32
  }
  func.func @transform_2(%arg0: i32, %arg1: i32) -> (i32, i32) {
    %c0_i32 = arith.constant 0 : i32
    %c0_i32_0 = arith.constant 0 : i32
    %c0_i32_1 = arith.constant 0 : i32
    return %c0_i32, %c0_i32_0 : i32, i32
  }
  func.func @transform_3(%arg0: i32, %arg1: i32) -> (i32, i32, i32) {
    %c0_i32 = arith.constant 0 : i32
    %c0_i32_0 = arith.constant 0 : i32
    %c0_i32_1 = arith.constant 0 : i32
    return %arg1, %c0_i32, %c0_i32_0 : i32, i32, i32
  }
  func.func @transform_4(%arg0: i32, %arg1: i32) -> (i32, i32, i32) {
    %c0_i32 = arith.constant 0 : i32
    %c0_i32_0 = arith.constant 0 : i32
    %c0_i32_1 = arith.constant 0 : i32
    return %arg1, %c0_i32, %c0_i32_0 : i32, i32, i32
  }
  func.func @transform_5(%arg0: i32, %arg1: i32) -> (i32, i32, i32) {
    %c0_i32 = arith.constant 0 : i32
    %c0_i32_0 = arith.constant 0 : i32
    %c0_i32_1 = arith.constant 0 : i32
    return %arg1, %c0_i32, %c0_i32_0 : i32, i32, i32
  }
  func.func @transform_6(%arg0: i32, %arg1: i32) -> (i32, i32, i32) {
    %c0_i32 = arith.constant 0 : i32
    %c0_i32_0 = arith.constant 0 : i32
    %c0_i32_1 = arith.constant 0 : i32
    return %arg1, %c0_i32, %c0_i32_0 : i32, i32, i32
  }
  func.func @transform_7(%arg0: i32, %arg1: i32) -> (i32, i32, i32) {
    %c0_i32 = arith.constant 0 : i32
    %c0_i32_0 = arith.constant 0 : i32
    %c0_i32_1 = arith.constant 0 : i32
    return %arg1, %c0_i32, %c0_i32_0 : i32, i32, i32
  }
  func.func @transform_8(%arg0: i32, %arg1: i32) -> (i32, i32, i32) {
    %c0_i32 = arith.constant 0 : i32
    %c0_i32_0 = arith.constant 0 : i32
    %c0_i32_1 = arith.constant 0 : i32
    return %arg1, %c0_i32, %c0_i32_0 : i32, i32, i32
  }
  func.func @transform_9(%arg0: i32, %arg1: i32) -> (i32, i32, i32) {
    %c0_i32 = arith.constant 0 : i32
    %c0_i32_0 = arith.constant 0 : i32
    %c0_i32_1 = arith.constant 0 : i32
    return %arg1, %c0_i32, %c0_i32_0 : i32, i32, i32
  }
  func.func @transform_10(%arg0: i32, %arg1: i32) -> (i32, i32, i32) {
    %c0_i32 = arith.constant 0 : i32
    %c0_i32_0 = arith.constant 0 : i32
    %c0_i32_1 = arith.constant 0 : i32
    return %arg1, %c0_i32, %c0_i32_0 : i32, i32, i32
  }
  func.func @transform_11(%arg0: i32, %arg1: i32) -> (i32, i32, i32) {
    %c0_i32 = arith.constant 0 : i32
    %c0_i32_0 = arith.constant 0 : i32
    %c0_i32_1 = arith.constant 0 : i32
    return %arg1, %c0_i32, %c0_i32_0 : i32, i32, i32
  }
  func.func @transform_12(%arg0: i32, %arg1: i32) -> (i32, i32, i32) {
    %c0_i32 = arith.constant 0 : i32
    %c0_i32_0 = arith.constant 0 : i32
    %c0_i32_1 = arith.constant 0 : i32
    return %arg1, %c0_i32, %c0_i32_0 : i32, i32, i32
  }
  func.func @transform_13(%arg0: i32, %arg1: i32) -> (i32, i32, i32) {
    %c0_i32 = arith.constant 0 : i32
    %c0_i32_0 = arith.constant 0 : i32
    %c0_i32_1 = arith.constant 0 : i32
    return %arg1, %c0_i32, %c0_i32_0 : i32, i32, i32
  }
  func.func @transform_14(%arg0: i32, %arg1: i32) -> (i32, i32, i32) {
    %c0_i32 = arith.constant 0 : i32
    %c0_i32_0 = arith.constant 0 : i32
    %c0_i32_1 = arith.constant 0 : i32
    return %arg1, %c0_i32, %c0_i32_0 : i32, i32, i32
  }
  func.func @transform_15(%arg0: i32, %arg1: i32) -> (i32, i32) {
    %c0_i32 = arith.constant 0 : i32
    %c0_i32_0 = arith.constant 0 : i32
    %c0_i32_1 = arith.constant 0 : i32
    return %c0_i32, %c0_i32_0 : i32, i32
  }
  func.func @transform_16(%arg0: i32, %arg1: i32) -> (i32, i32) {
    %c0_i32 = arith.constant 0 : i32
    %c0_i32_0 = arith.constant 0 : i32
    %c0_i32_1 = arith.constant 0 : i32
    return %c0_i32, %c0_i32_0 : i32, i32
  }
  func.func @transform_17(%arg0: i32, %arg1: i32) -> (i32, i32) {
    %c0_i32 = arith.constant 0 : i32
    %c0_i32_0 = arith.constant 0 : i32
    %c0_i32_1 = arith.constant 0 : i32
    return %c0_i32, %c0_i32_0 : i32, i32
  }
  func.func @transform_18(%arg0: i32, %arg1: i32) -> (i32, i32) {
    %c0_i32 = arith.constant 0 : i32
    %c0_i32_0 = arith.constant 0 : i32
    %c0_i32_1 = arith.constant 0 : i32
    return %c0_i32, %c0_i32_0 : i32, i32
  }
  func.func @transform_19(%arg0: i32, %arg1: i32) -> (i32, i32) {
    %c0_i32 = arith.constant 0 : i32
    %c0_i32_0 = arith.constant 0 : i32
    return %arg0, %c0_i32 : i32, i32
  }
}

</mosaic_0001>

<llo_original>
// kernel: original_mixer_forward.1
$region0: #{original_mixer_forward.1}
  #allocation0 [shape = 'u32[]', space=smem, size = 0x4, offset = 0x4, fixed_abs, tag = 'smem constant byte address 0x4 - core index']
  #allocation1 [shape = 'u32[144,128]{1,0:T(1,128)}', space=vmem, size = 0x12000, scoped, tag = 'internal scratch']
  #allocation2 [shape = 'f32[16,32]{1,0:T(8,128)}', space=vmem, size = 0x2000, scoped, tag = 'scratch operand']
  %s0 = inlined_call_operand.vmem [shape: f32[32,48], index: 0, kind: input, shape index: {}]
  %s1 = inlined_call_operand.vmem [shape: f32[48,32], index: 1, kind: input, shape index: {}]
  %s2 = inlined_call_operand.vmem [shape: f32[1,32], index: 2, kind: input, shape index: {}]
  %s3 = inlined_call_operand.vmem [shape: f32[2,1,32], index: 3, kind: input, shape index: {}]
  %s4 = inlined_call_operand.vmem [shape: f32[2,1,32], index: 4, kind: input, shape index: {}]
  %s5 = inlined_call_operand.vmem [shape: f32[2,16,16], index: 5, kind: input, shape index: {}]
  %s6 = inlined_call_operand.vmem [shape: f32[2,16,1], index: 6, kind: input, shape index: {}]
  %s7 = inlined_call_operand.vmem [shape: f32[2,16,16], index: 7, kind: input, shape index: {}]
  %s8 = inlined_call_operand.vmem [shape: f32[2,16,1], index: 8, kind: input, shape index: {}]
  %s9 = inlined_call_operand.vmem [shape: f32[2,1,32], index: 9, kind: input, shape index: {}]
  %s10 = inlined_call_operand.vmem [shape: f32[2,1,32], index: 10, kind: input, shape index: {}]
  %s11 = inlined_call_operand.vmem [shape: f32[2,32,64], index: 11, kind: input, shape index: {}]
  %s12 = inlined_call_operand.vmem [shape: f32[2,1,64], index: 12, kind: input, shape index: {}]
  %s13 = inlined_call_operand.vmem [shape: f32[2,64,32], index: 13, kind: input, shape index: {}]
  %s14 = inlined_call_operand.vmem [shape: f32[2,1,32], index: 14, kind: input, shape index: {}]
  %s15 = inlined_call_operand.vmem [shape: f32[1,32], index: 15, kind: input, shape index: {}]
  %s16 = inlined_call_operand.vmem [shape: f32[1,32], index: 16, kind: input, shape index: {}]
  %s17 = inlined_call_operand.vmem [shape: f32[32,128], index: 17, kind: input, shape index: {}]
  %s18 = inlined_call_operand.vmem [shape: f32[1,128], index: 18, kind: input, shape index: {}]
  %s19 = inlined_call_operand.vmem [shape: f32[32,128], index: 19, kind: output, shape index: {}]
  %s20 = sld [smem:[#allocation0]]
  $region117: #{original_mixer_forward.1} parent=0
    _
  %s22 = ssub.s32 1, %s20
  %s23 = scalar_select 0, %s22, %s20
  loop: start=0, step=1, limit=6
  $region2: #{original_mixer_forward.1} parent=0 // loop_pre_header
    _
  $region3: #{original_mixer_forward.1} parent=0 // loop_header
    %s25 = sphi 0, %s29
    %p26 = scmp.ge.s32.totalorder %s25, 6
    %s32 = sphi 0, %s44
    %s33 = sphi 0, %s40
    %s34 = sphi 0, %s32
    %s35 = sphi 0, %s33
    %s36 = sphi 0, %s34
    %s37 = sphi 0, %s35
    %s47 = sphi 0, %s49
    %s50 = sphi 0, %s47
    %s51 = sphi 0, %s50
    %s67 = sphi 0, %s51
    %s71 = sphi 0, %s71
    %s73 = sphi 0, %s71
    %s74 = sphi 0, %s73
    %s88 = sphi 0, %s74
    %s92 = sphi 0, %s92
    %s94 = sphi 0, %s92
    %s95 = sphi 0, %s94
    %s109 = sphi 0, %s95
    %s115 = sphi 0, %s117
    %s118 = sphi 0, %s115
    %s119 = sphi 0, %s118
    %s135 = sphi 0, %s119
    %s141 = sphi 0, %s143
    %s144 = sphi 0, %s141
    %s145 = sphi 0, %s144
    %s161 = sphi 0, %s145
    %s167 = sphi 0, %s169
    %s170 = sphi 0, %s167
    %s171 = sphi 0, %s170
    %s187 = sphi 0, %s171
    %s193 = sphi 0, %s195
    %s196 = sphi 0, %s193
    %s197 = sphi 0, %s196
    %s213 = sphi 0, %s197
    %s219 = sphi 0, %s221
    %s222 = sphi 0, %s219
    %s223 = sphi 0, %s222
    %s239 = sphi 0, %s223
    %s245 = sphi 0, %s247
    %s248 = sphi 0, %s245
    %s249 = sphi 0, %s248
    %s265 = sphi 0, %s249
    %s271 = sphi 0, %s273
    %s274 = sphi 0, %s271
    %s275 = sphi 0, %s274
    %s291 = sphi 0, %s275
    %s297 = sphi 0, %s299
    %s300 = sphi 0, %s297
    %s301 = sphi 0, %s300
    %s317 = sphi 0, %s301
    %s323 = sphi 0, %s325
    %s326 = sphi 0, %s323
    %s327 = sphi 0, %s326
    %s343 = sphi 0, %s327
    %s349 = sphi 0, %s351
    %s352 = sphi 0, %s349
    %s353 = sphi 0, %s352
    %s369 = sphi 0, %s353
    %s375 = sphi 0, %s377
    %s378 = sphi 0, %s375
    %s379 = sphi 0, %s378
    %s395 = sphi 0, %s379
    %s401 = sphi 0, %s403
    %s404 = sphi 0, %s401
    %s405 = sphi 0, %s404
    %s421 = sphi 0, %s405
    %s425 = sphi 0, %s425
    %s427 = sphi 0, %s425
    %s428 = sphi 0, %s427
    %s442 = sphi 0, %s428
    %s446 = sphi 0, %s446
    %s448 = sphi 0, %s446
    %s449 = sphi 0, %s448
    %s463 = sphi 0, %s449
    %s467 = sphi 0, %s467
    %s469 = sphi 0, %s467
    %s470 = sphi 0, %s469
    %s484 = sphi 0, %s470
    %s488 = sphi 0, %s488
    %s490 = sphi 0, %s488
    %s491 = sphi 0, %s490
    %s505 = sphi 0, %s491
    %s511 = sphi 0, %s513
    %s514 = sphi 0, %s511
    %s515 = sphi 0, %s514
    %s531 = sphi 0, %s515
  $region4: #{original_mixer_forward.1} parent=0 // loop_header_branch
    %28 = sbr.rel (%p26) target = $region8
  $region5: #{original_mixer_forward.1} parent=0 // loop_body
    %s30 = ssub.s32 %s25, 1
    %s31 = ssub.s32 %s25, 2
    %s38 = sadd.s32 1, %s33
    %p39 = scmp.ge.s32.totalorder %s38, 2
    %s40 = scalar_select %p39, 0, %s38
    %s41 = sadd.s32 1, %s32
    %s42 = scalar_select %p39, %s41, %s32
    %p43 = scmp.ge.s32.totalorder %s42, 2
    %s44 = scalar_select %p43, 0, %s42
    %s45 = ssub.s32 %s32, %s44
    %p46 = scmp.eq.s32.totalorder %s45, 0
    %s48 = sadd.s32 %s47, 1
    %s49 = scalar_select %p46, %s47, %s48
    %p52 = pneg %p46
    %p53 = scmp.eq.s32.totalorder %s25, 3
    %p54 = por %p52, %p53
    %p55 = scmp.ne.s32.totalorder %s47, %s50
    %p56 = scmp.eq.s32.totalorder %s25, 0
    %p57 = por %p55, %p56
    %p58 = scmp.ne.s32.totalorder %s47, %s50
    %p59 = scmp.eq.s32.totalorder %s30, 3
    %p60 = por %p58, %p59
    %p61 = scmp.ne.s32.totalorder %s50, %s51
    %p62 = scmp.eq.s32.totalorder %s30, 0
    %p63 = por %p61, %p62
    %p64 = scmp.ne.s32.totalorder %s50, %s51
    %p65 = scmp.eq.s32.totalorder %s31, 3
    %p66 = por %p64, %p65
    %p68 = scmp.ne.s32.totalorder %s51, %s67
    %p69 = scmp.eq.s32.totalorder %s31, 0
    %p70 = por %p68, %p69
    %s72 = sadd.s32 %s71, 1
    %p75 = scmp.eq.s32.totalorder %s25, 3
    %p76 = scmp.ne.s32.totalorder %s71, %s73
    %p77 = scmp.eq.s32.totalorder %s25, 0
    %p78 = por %p76, %p77
    %p79 = scmp.ne.s32.totalorder %s71, %s73
    %p80 = scmp.eq.s32.totalorder %s30, 3
    %p81 = por %p79, %p80
    %p82 = scmp.ne.s32.totalorder %s73, %s74
    %p83 = scmp.eq.s32.totalorder %s30, 0
    %p84 = por %p82, %p83
    %p85 = scmp.ne.s32.totalorder %s73, %s74
    %p86 = scmp.eq.s32.totalorder %s31, 3
    %p87 = por %p85, %p86
    %p89 = scmp.ne.s32.totalorder %s74, %s88
    %p90 = scmp.eq.s32.totalorder %s31, 0
    %p91 = por %p89, %p90
    %s93 = sadd.s32 %s92, 1
    %p96 = scmp.eq.s32.totalorder %s25, 3
    %p97 = scmp.ne.s32.totalorder %s92, %s94
    %p98 = scmp.eq.s32.totalorder %s25, 0
    %p99 = por %p97, %p98
    %p100 = scmp.ne.s32.totalorder %s92, %s94
    %p101 = scmp.eq.s32.totalorder %s30, 3
    %p102 = por %p100, %p101
    %p103 = scmp.ne.s32.totalorder %s94, %s95
    %p104 = scmp.eq.s32.totalorder %s30, 0
    %p105 = por %p103, %p104
    %p106 = scmp.ne.s32.totalorder %s94, %s95
    %p107 = scmp.eq.s32.totalorder %s31, 3
    %p108 = por %p106, %p107
    %p110 = scmp.ne.s32.totalorder %s95, %s109
    %p111 = scmp.eq.s32.totalorder %s31, 0
    %p112 = por %p110, %p111
    %s113 = ssub.s32 %s33, %s40
    %p114 = scmp.eq.s32.totalorder %s113, 0
    %s116 = sadd.s32 %s115, 1
    %s117 = scalar_select %p114, %s115, %s116
    %p120 = pneg %p114
    %p121 = scmp.eq.s32.totalorder %s25, 3
    %p122 = por %p120, %p121
    %p123 = scmp.ne.s32.totalorder %s115, %s118
    %p124 = scmp.eq.s32.totalorder %s25, 0
    %p125 = por %p123, %p124
    %p126 = scmp.ne.s32.totalorder %s115, %s118
    %p127 = scmp.eq.s32.totalorder %s30, 3
    %p128 = por %p126, %p127
    %p129 = scmp.ne.s32.totalorder %s118, %s119
    %p130 = scmp.eq.s32.totalorder %s30, 0
    %p131 = por %p129, %p130
    %p132 = scmp.ne.s32.totalorder %s118, %s119
    %p133 = scmp.eq.s32.totalorder %s31, 3
    %p134 = por %p132, %p133
    %p136 = scmp.ne.s32.totalorder %s119, %s135
    %p137 = scmp.eq.s32.totalorder %s31, 0
    %p138 = por %p136, %p137
    %s139 = ssub.s32 %s33, %s40
    %p140 = scmp.eq.s32.totalorder %s139, 0
    %s142 = sadd.s32 %s141, 1
    %s143 = scalar_select %p140, %s141, %s142
    %p146 = pneg %p140
    %p147 = scmp.eq.s32.totalorder %s25, 3
    %p148 = por %p146, %p147
    %p149 = scmp.ne.s32.totalorder %s141, %s144
    %p150 = scmp.eq.s32.totalorder %s25, 0
    %p151 = por %p149, %p150
    %p152 = scmp.ne.s32.totalorder %s141, %s144
    %p153 = scmp.eq.s32.totalorder %s30, 3
    %p154 = por %p152, %p153
    %p155 = scmp.ne.s32.totalorder %s144, %s145
    %p156 = scmp.eq.s32.totalorder %s30, 0
    %p157 = por %p155, %p156
    %p158 = scmp.ne.s32.totalorder %s144, %s145
    %p159 = scmp.eq.s32.totalorder %s31, 3
    %p160 = por %p158, %p159
    %p162 = scmp.ne.s32.totalorder %s145, %s161
    %p163 = scmp.eq.s32.totalorder %s31, 0
    %p164 = por %p162, %p163
    %s165 = ssub.s32 %s33, %s40
    %p166 = scmp.eq.s32.totalorder %s165, 0
    %s168 = sadd.s32 %s167, 1
    %s169 = scalar_select %p166, %s167, %s168
    %p172 = pneg %p166
    %p173 = scmp.eq.s32.totalorder %s25, 3
    %p174 = por %p172, %p173
    %p175 = scmp.ne.s32.totalorder %s167, %s170
    %p176 = scmp.eq.s32.totalorder %s25, 0
    %p177 = por %p175, %p176
    %p178 = scmp.ne.s32.totalorder %s167, %s170
    %p179 = scmp.eq.s32.totalorder %s30, 3
    %p180 = por %p178, %p179
    %p181 = scmp.ne.s32.totalorder %s170, %s171
    %p182 = scmp.eq.s32.totalorder %s30, 0
    %p183 = por %p181, %p182
    %p184 = scmp.ne.s32.totalorder %s170, %s171
    %p185 = scmp.eq.s32.totalorder %s31, 3
    %p186 = por %p184, %p185
    %p188 = scmp.ne.s32.totalorder %s171, %s187
    %p189 = scmp.eq.s32.totalorder %s31, 0
    %p190 = por %p188, %p189
    %s191 = ssub.s32 %s33, %s40
    %p192 = scmp.eq.s32.totalorder %s191, 0
    %s194 = sadd.s32 %s193, 1
    %s195 = scalar_select %p192, %s193, %s194
    %p198 = pneg %p192
    %p199 = scmp.eq.s32.totalorder %s25, 3
    %p200 = por %p198, %p199
    %p201 = scmp.ne.s32.totalorder %s193, %s196
    %p202 = scmp.eq.s32.totalorder %s25, 0
    %p203 = por %p201, %p202
    %p204 = scmp.ne.s32.totalorder %s193, %s196
    %p205 = scmp.eq.s32.totalorder %s30, 3
    %p206 = por %p204, %p205
    %p207 = scmp.ne.s32.totalorder %s196, %s197
    %p208 = scmp.eq.s32.totalorder %s30, 0
    %p209 = por %p207, %p208
    %p210 = scmp.ne.s32.totalorder %s196, %s197
    %p211 = scmp.eq.s32.totalorder %s31, 3
    %p212 = por %p210, %p211
    %p214 = scmp.ne.s32.totalorder %s197, %s213
    %p215 = scmp.eq.s32.totalorder %s31, 0
    %p216 = por %p214, %p215
    %s217 = ssub.s32 %s33, %s40
    %p218 = scmp.eq.s32.totalorder %s217, 0
    %s220 = sadd.s32 %s219, 1
    %s221 = scalar_select %p218, %s219, %s220
    %p224 = pneg %p218
    %p225 = scmp.eq.s32.totalorder %s25, 3
    %p226 = por %p224, %p225
    %p227 = scmp.ne.s32.totalorder %s219, %s222
    %p228 = scmp.eq.s32.totalorder %s25, 0
    %p229 = por %p227, %p228
    %p230 = scmp.ne.s32.totalorder %s219, %s222
    %p231 = scmp.eq.s32.totalorder %s30, 3
    %p232 = por %p230, %p231
    %p233 = scmp.ne.s32.totalorder %s222, %s223
    %p234 = scmp.eq.s32.totalorder %s30, 0
    %p235 = por %p233, %p234
    %p236 = scmp.ne.s32.totalorder %s222, %s223
    %p237 = scmp.eq.s32.totalorder %s31, 3
    %p238 = por %p236, %p237
    %p240 = scmp.ne.s32.totalorder %s223, %s239
    %p241 = scmp.eq.s32.totalorder %s31, 0
    %p242 = por %p240, %p241
    %s243 = ssub.s32 %s33, %s40
    %p244 = scmp.eq.s32.totalorder %s243, 0
    %s246 = sadd.s32 %s245, 1
    %s247 = scalar_select %p244, %s245, %s246
    %p250 = pneg %p244
    %p251 = scmp.eq.s32.totalorder %s25, 3
    %p252 = por %p250, %p251
    %p253 = scmp.ne.s32.totalorder %s245, %s248
    %p254 = scmp.eq.s32.totalorder %s25, 0
    %p255 = por %p253, %p254
    %p256 = scmp.ne.s32.totalorder %s245, %s248
    %p257 = scmp.eq.s32.totalorder %s30, 3
    %p258 = por %p256, %p257
    %p259 = scmp.ne.s32.totalorder %s248, %s249
    %p260 = scmp.eq.s32.totalorder %s30, 0
    %p261 = por %p259, %p260
    %p262 = scmp.ne.s32.totalorder %s248, %s249
    %p263 = scmp.eq.s32.totalorder %s31, 3
    %p264 = por %p262, %p263
    %p266 = scmp.ne.s32.totalorder %s249, %s265
    %p267 = scmp.eq.s32.totalorder %s31, 0
    %p268 = por %p266, %p267
    %s269 = ssub.s32 %s33, %s40
    %p270 = scmp.eq.s32.totalorder %s269, 0
    %s272 = sadd.s32 %s271, 1
    %s273 = scalar_select %p270, %s271, %s272
    %p276 = pneg %p270
    %p277 = scmp.eq.s32.totalorder %s25, 3
    %p278 = por %p276, %p277
    %p279 = scmp.ne.s32.totalorder %s271, %s274
    %p280 = scmp.eq.s32.totalorder %s25, 0
    %p281 = por %p279, %p280
    %p282 = scmp.ne.s32.totalorder %s271, %s274
    %p283 = scmp.eq.s32.totalorder %s30, 3
    %p284 = por %p282, %p283
    %p285 = scmp.ne.s32.totalorder %s274, %s275
    %p286 = scmp.eq.s32.totalorder %s30, 0
    %p287 = por %p285, %p286
    %p288 = scmp.ne.s32.totalorder %s274, %s275
    %p289 = scmp.eq.s32.totalorder %s31, 3
    %p290 = por %p288, %p289
    %p292 = scmp.ne.s32.totalorder %s275, %s291
    %p293 = scmp.eq.s32.totalorder %s31, 0
    %p294 = por %p292, %p293
    %s295 = ssub.s32 %s33, %s40
    %p296 = scmp.eq.s32.totalorder %s295, 0
    %s298 = sadd.s32 %s297, 1
    %s299 = scalar_select %p296, %s297, %s298
    %p302 = pneg %p296
    %p303 = scmp.eq.s32.totalorder %s25, 3
    %p304 = por %p302, %p303
    %p305 = scmp.ne.s32.totalorder %s297, %s300
    %p306 = scmp.eq.s32.totalorder %s25, 0
    %p307 = por %p305, %p306
    %p308 = scmp.ne.s32.totalorder %s297, %s300
    %p309 = scmp.eq.s32.totalorder %s30, 3
    %p310 = por %p308, %p309
    %p311 = scmp.ne.s32.totalorder %s300, %s301
    %p312 = scmp.eq.s32.totalorder %s30, 0
    %p313 = por %p311, %p312
    %p314 = scmp.ne.s32.totalorder %s300, %s301
    %p315 = scmp.eq.s32.totalorder %s31, 3
    %p316 = por %p314, %p315
    %p318 = scmp.ne.s32.totalorder %s301, %s317
    %p319 = scmp.eq.s32.totalorder %s31, 0
    %p320 = por %p318, %p319
    %s321 = ssub.s32 %s33, %s40
    %p322 = scmp.eq.s32.totalorder %s321, 0
    %s324 = sadd.s32 %s323, 1
    %s325 = scalar_select %p322, %s323, %s324
    %p328 = pneg %p322
    %p329 = scmp.eq.s32.totalorder %s25, 3
    %p330 = por %p328, %p329
    %p331 = scmp.ne.s32.totalorder %s323, %s326
    %p332 = scmp.eq.s32.totalorder %s25, 0
    %p333 = por %p331, %p332
    %p334 = scmp.ne.s32.totalorder %s323, %s326
    %p335 = scmp.eq.s32.totalorder %s30, 3
    %p336 = por %p334, %p335
    %p337 = scmp.ne.s32.totalorder %s326, %s327
    %p338 = scmp.eq.s32.totalorder %s30, 0
    %p339 = por %p337, %p338
    %p340 = scmp.ne.s32.totalorder %s326, %s327
    %p341 = scmp.eq.s32.totalorder %s31, 3
    %p342 = por %p340, %p341
    %p344 = scmp.ne.s32.totalorder %s327, %s343
    %p345 = scmp.eq.s32.totalorder %s31, 0
    %p346 = por %p344, %p345
    %s347 = ssub.s32 %s33, %s40
    %p348 = scmp.eq.s32.totalorder %s347, 0
    %s350 = sadd.s32 %s349, 1
    %s351 = scalar_select %p348, %s349, %s350
    %p354 = pneg %p348
    %p355 = scmp.eq.s32.totalorder %s25, 3
    %p356 = por %p354, %p355
    %p357 = scmp.ne.s32.totalorder %s349, %s352
    %p358 = scmp.eq.s32.totalorder %s25, 0
    %p359 = por %p357, %p358
    %p360 = scmp.ne.s32.totalorder %s349, %s352
    %p361 = scmp.eq.s32.totalorder %s30, 3
    %p362 = por %p360, %p361
    %p363 = scmp.ne.s32.totalorder %s352, %s353
    %p364 = scmp.eq.s32.totalorder %s30, 0
    %p365 = por %p363, %p364
    %p366 = scmp.ne.s32.totalorder %s352, %s353
    %p367 = scmp.eq.s32.totalorder %s31, 3
    %p368 = por %p366, %p367
    %p370 = scmp.ne.s32.totalorder %s353, %s369
    %p371 = scmp.eq.s32.totalorder %s31, 0
    %p372 = por %p370, %p371
    %s373 = ssub.s32 %s33, %s40
    %p374 = scmp.eq.s32.totalorder %s373, 0
    %s376 = sadd.s32 %s375, 1
    %s377 = scalar_select %p374, %s375, %s376
    %p380 = pneg %p374
    %p381 = scmp.eq.s32.totalorder %s25, 3
    %p382 = por %p380, %p381
    %p383 = scmp.ne.s32.totalorder %s375, %s378
    %p384 = scmp.eq.s32.totalorder %s25, 0
    %p385 = por %p383, %p384
    %p386 = scmp.ne.s32.totalorder %s375, %s378
    %p387 = scmp.eq.s32.totalorder %s30, 3
    %p388 = por %p386, %p387
    %p389 = scmp.ne.s32.totalorder %s378, %s379
    %p390 = scmp.eq.s32.totalorder %s30, 0
    %p391 = por %p389, %p390
    %p392 = scmp.ne.s32.totalorder %s378, %s379
    %p393 = scmp.eq.s32.totalorder %s31, 3
    %p394 = por %p392, %p393
    %p396 = scmp.ne.s32.totalorder %s379, %s395
    %p397 = scmp.eq.s32.totalorder %s31, 0
    %p398 = por %p396, %p397
    %s399 = ssub.s32 %s33, %s40
    %p400 = scmp.eq.s32.totalorder %s399, 0
    %s402 = sadd.s32 %s401, 1
    %s403 = scalar_select %p400, %s401, %s402
    %p406 = pneg %p400
    %p407 = scmp.eq.s32.totalorder %s25, 3
    %p408 = por %p406, %p407
    %p409 = scmp.ne.s32.totalorder %s401, %s404
    %p410 = scmp.eq.s32.totalorder %s25, 0
    %p411 = por %p409, %p410
    %p412 = scmp.ne.s32.totalorder %s401, %s404
    %p413 = scmp.eq.s32.totalorder %s30, 3
    %p414 = por %p412, %p413
    %p415 = scmp.ne.s32.totalorder %s404, %s405
    %p416 = scmp.eq.s32.totalorder %s30, 0
    %p417 = por %p415, %p416
    %p418 = scmp.ne.s32.totalorder %s404, %s405
    %p419 = scmp.eq.s32.totalorder %s31, 3
    %p420 = por %p418, %p419
    %p422 = scmp.ne.s32.totalorder %s405, %s421
    %p423 = scmp.eq.s32.totalorder %s31, 0
    %p424 = por %p422, %p423
    %s426 = sadd.s32 %s425, 1
    %p429 = scmp.eq.s32.totalorder %s25, 3
    %p430 = scmp.ne.s32.totalorder %s425, %s427
    %p431 = scmp.eq.s32.totalorder %s25, 0
    %p432 = por %p430, %p431
    %p433 = scmp.ne.s32.totalorder %s425, %s427
    %p434 = scmp.eq.s32.totalorder %s30, 3
    %p435 = por %p433, %p434
    %p436 = scmp.ne.s32.totalorder %s427, %s428
    %p437 = scmp.eq.s32.totalorder %s30, 0
    %p438 = por %p436, %p437
    %p439 = scmp.ne.s32.totalorder %s427, %s428
    %p440 = scmp.eq.s32.totalorder %s31, 3
    %p441 = por %p439, %p440
    %p443 = scmp.ne.s32.totalorder %s428, %s442
    %p444 = scmp.eq.s32.totalorder %s31, 0
    %p445 = por %p443, %p444
    %s447 = sadd.s32 %s446, 1
    %p450 = scmp.eq.s32.totalorder %s25, 3
    %p451 = scmp.ne.s32.totalorder %s446, %s448
    %p452 = scmp.eq.s32.totalorder %s25, 0
    %p453 = por %p451, %p452
    %p454 = scmp.ne.s32.totalorder %s446, %s448
    %p455 = scmp.eq.s32.totalorder %s30, 3
    %p456 = por %p454, %p455
    %p457 = scmp.ne.s32.totalorder %s448, %s449
    %p458 = scmp.eq.s32.totalorder %s30, 0
    %p459 = por %p457, %p458
    %p460 = scmp.ne.s32.totalorder %s448, %s449
    %p461 = scmp.eq.s32.totalorder %s31, 3
    %p462 = por %p460, %p461
    %p464 = scmp.ne.s32.totalorder %s449, %s463
    %p465 = scmp.eq.s32.totalorder %s31, 0
    %p466 = por %p464, %p465
    %s468 = sadd.s32 %s467, 1
    %p471 = scmp.eq.s32.totalorder %s25, 3
    %p472 = scmp.ne.s32.totalorder %s467, %s469
    %p473 = scmp.eq.s32.totalorder %s25, 0
    %p474 = por %p472, %p473
    %p475 = scmp.ne.s32.totalorder %s467, %s469
    %p476 = scmp.eq.s32.totalorder %s30, 3
    %p477 = por %p475, %p476
    %p478 = scmp.ne.s32.totalorder %s469, %s470
    %p479 = scmp.eq.s32.totalorder %s30, 0
    %p480 = por %p478, %p479
    %p481 = scmp.ne.s32.totalorder %s469, %s470
    %p482 = scmp.eq.s32.totalorder %s31, 3
    %p483 = por %p481, %p482
    %p485 = scmp.ne.s32.totalorder %s470, %s484
    %p486 = scmp.eq.s32.totalorder %s31, 0
    %p487 = por %p485, %p486
    %s489 = sadd.s32 %s488, 1
    %p492 = scmp.eq.s32.totalorder %s25, 3
    %p493 = scmp.ne.s32.totalorder %s488, %s490
    %p494 = scmp.eq.s32.totalorder %s25, 0
    %p495 = por %p493, %p494
    %p496 = scmp.ne.s32.totalorder %s488, %s490
    %p497 = scmp.eq.s32.totalorder %s30, 3
    %p498 = por %p496, %p497
    %p499 = scmp.ne.s32.totalorder %s490, %s491
    %p500 = scmp.eq.s32.totalorder %s30, 0
    %p501 = por %p499, %p500
    %p502 = scmp.ne.s32.totalorder %s490, %s491
    %p503 = scmp.eq.s32.totalorder %s31, 3
    %p504 = por %p502, %p503
    %p506 = scmp.ne.s32.totalorder %s491, %s505
    %p507 = scmp.eq.s32.totalorder %s31, 0
    %p508 = por %p506, %p507
    %s509 = ssub.s32 %s32, %s44
    %p510 = scmp.eq.s32.totalorder %s509, 0
    %s512 = sadd.s32 %s511, 1
    %s513 = scalar_select %p510, %s511, %s512
    %p516 = pneg %p510
    %p517 = scmp.eq.s32.totalorder %s25, 3
    %p518 = por %p516, %p517
    %p519 = scmp.ne.s32.totalorder %s511, %s514
    %p520 = scmp.eq.s32.totalorder %s25, 0
    %p521 = por %p519, %p520
    %p522 = scmp.ne.s32.totalorder %s511, %s514
    %p523 = scmp.eq.s32.totalorder %s30, 3
    %p524 = por %p522, %p523
    %p525 = scmp.ne.s32.totalorder %s514, %s515
    %p526 = scmp.eq.s32.totalorder %s30, 0
    %p527 = por %p525, %p526
    %p528 = scmp.ne.s32.totalorder %s514, %s515
    %p529 = scmp.eq.s32.totalorder %s31, 3
    %p530 = por %p528, %p529
    %p532 = scmp.ne.s32.totalorder %s515, %s531
    %p533 = scmp.eq.s32.totalorder %s31, 0
    %p534 = por %p532, %p533
    %p535 = scmp.le.s32.totalorder 1, %s25
    %p536 = scmp.lt.s32.totalorder %s25, 5
    %p537 = pnand %p535, %p536
    %p538 = pneg %p537
    // Predicated region
    $region9: #{original_mixer_forward.1} parent=5 // pred_check
      _
    $region10: #{original_mixer_forward.1} parent=5 // pred_check_branch
      %540 = sbr.rel (%p537) target = $region12
    $region11: #{original_mixer_forward.1} parent=5 // pred_region
      %s541 = ssub.s32 %s25, 1
      // Predicated region
      $region13: #{original_mixer_forward.1} parent=11 // pred_check
        %p542 = pneg %p84
      $region14: #{original_mixer_forward.1} parent=11 // pred_check_branch
        %544 = sbr.rel (%p542) target = $region16
      $region15: #{original_mixer_forward.1} parent=11 // pred_region
        _
      $region16: #{original_mixer_forward.1} parent=11 // pred_fallthru
        _
      // Predicated region
      $region17: #{original_mixer_forward.1} parent=11 // pred_check
        %p545 = pneg %p105
      $region18: #{original_mixer_forward.1} parent=11 // pred_check_branch
        %547 = sbr.rel (%p545) target = $region20
      $region19: #{original_mixer_forward.1} parent=11 // pred_region
        _
      $region20: #{original_mixer_forward.1} parent=11 // pred_fallthru
        _
      // Predicated region
      $region21: #{original_mixer_forward.1} parent=11 // pred_check
        %p548 = pneg %p438
      $region22: #{original_mixer_forward.1} parent=11 // pred_check_branch
        %550 = sbr.rel (%p548) target = $region24
      $region23: #{original_mixer_forward.1} parent=11 // pred_region
        _
      $region24: #{original_mixer_forward.1} parent=11 // pred_fallthru
        _
      // Predicated region
      $region25: #{original_mixer_forward.1} parent=11 // pred_check
        %p551 = pneg %p459
      $region26: #{original_mixer_forward.1} parent=11 // pred_check_branch
        %553 = sbr.rel (%p551) target = $region28
      $region27: #{original_mixer_forward.1} parent=11 // pred_region
        _
      $region28: #{original_mixer_forward.1} parent=11 // pred_fallthru
        _
      // Predicated region
      $region29: #{original_mixer_forward.1} parent=11 // pred_check
        %p554 = pneg %p480
      $region30: #{original_mixer_forward.1} parent=11 // pred_check_branch
        %556 = sbr.rel (%p554) target = $region32
      $region31: #{original_mixer_forward.1} parent=11 // pred_region
        _
      $region32: #{original_mixer_forward.1} parent=11 // pred_fallthru
        _
      // Predicated region
      $region33: #{original_mixer_forward.1} parent=11 // pred_check
        %p557 = pneg %p501
      $region34: #{original_mixer_forward.1} parent=11 // pred_check_branch
        %559 = sbr.rel (%p557) target = $region36
      $region35: #{original_mixer_forward.1} parent=11 // pred_region
        _
      $region36: #{original_mixer_forward.1} parent=11 // pred_fallthru
        _
    $region12: #{original_mixer_forward.1} parent=5 // pred_fallthru
      _
    %p560 = scmp.lt.s32.totalorder %s25, 4
    // Predicated region
    $region37: #{original_mixer_forward.1} parent=5 // pred_check
      %p561 = pneg %p560
    $region38: #{original_mixer_forward.1} parent=5 // pred_check_branch
      %563 = sbr.rel (%p561) target = $region40
    $region39: #{original_mixer_forward.1} parent=5 // pred_region
      // Predicated region
      $region41: #{original_mixer_forward.1} parent=39 // pred_check
        %p564 = pneg %p57
      $region42: #{original_mixer_forward.1} parent=39 // pred_check_branch
        %566 = sbr.rel (%p564) target = $region44
      $region43: #{original_mixer_forward.1} parent=39 // pred_region
        %s567 = smul.u32 2, %s32
        %p568 = scmp.lt.s32.totalorder %s567, 3
        %s569 = scalar_select %p568, %s567, 3
        %s570 = smul.addr %s569, 8
        %s571 = scalar_lea.vmem %s0, %s570
        %s572 = smul.u32 2, %s32
      $region44: #{original_mixer_forward.1} parent=39 // pred_fallthru
        _
      // Predicated region
      $region45: #{original_mixer_forward.1} parent=39 // pred_check
        %p573 = pneg %p125
      $region46: #{original_mixer_forward.1} parent=39 // pred_check_branch
        %575 = sbr.rel (%p573) target = $region48
      $region47: #{original_mixer_forward.1} parent=39 // pred_region
        %p576 = scmp.lt.s32.totalorder %s33, 1
        %s577 = scalar_select %p576, %s33, 1
        %s578 = scalar_lea.vmem %s3, %s577
      $region48: #{original_mixer_forward.1} parent=39 // pred_fallthru
        _
      // Predicated region
      $region49: #{original_mixer_forward.1} parent=39 // pred_check
        %p579 = pneg %p151
      $region50: #{original_mixer_forward.1} parent=39 // pred_check_branch
        %581 = sbr.rel (%p579) target = $region52
      $region51: #{original_mixer_forward.1} parent=39 // pred_region
        %p582 = scmp.lt.s32.totalorder %s33, 1
        %s583 = scalar_select %p582, %s33, 1
        %s584 = scalar_lea.vmem %s4, %s583
      $region52: #{original_mixer_forward.1} parent=39 // pred_fallthru
        _
      // Predicated region
      $region53: #{original_mixer_forward.1} parent=39 // pred_check
        %p585 = pneg %p177
      $region54: #{original_mixer_forward.1} parent=39 // pred_check_branch
        %587 = sbr.rel (%p585) target = $region56
      $region55: #{original_mixer_forward.1} parent=39 // pred_region
        %p588 = scmp.lt.s32.totalorder %s33, 1
        %s589 = scalar_select %p588, %s33, 1
        %s590 = smul.addr %s589, 2
        %s591 = smul.addr %s590, 8
        %s592 = scalar_lea.vmem %s5, %s591
      $region56: #{original_mixer_forward.1} parent=39 // pred_fallthru
        _
      // Predicated region
      $region57: #{original_mixer_forward.1} parent=39 // pred_check
        %p593 = pneg %p203
      $region58: #{original_mixer_forward.1} parent=39 // pred_check_branch
        %595 = sbr.rel (%p593) target = $region60
      $region59: #{original_mixer_forward.1} parent=39 // pred_region
        %p596 = scmp.lt.s32.totalorder %s33, 1
        %s597 = scalar_select %p596, %s33, 1
        %s598 = smul.addr %s597, 2
        %s599 = smul.addr %s598, 8
        %s600 = scalar_lea.vmem %s6, %s599
      $region60: #{original_mixer_forward.1} parent=39 // pred_fallthru
        _
      // Predicated region
      $region61: #{original_mixer_forward.1} parent=39 // pred_check
        %p601 = pneg %p229
      $region62: #{original_mixer_forward.1} parent=39 // pred_check_branch
        %603 = sbr.rel (%p601) target = $region64
      $region63: #{original_mixer_forward.1} parent=39 // pred_region
        %p604 = scmp.lt.s32.totalorder %s33, 1
        %s605 = scalar_select %p604, %s33, 1
        %s606 = smul.addr %s605, 2
        %s607 = smul.addr %s606, 8
        %s608 = scalar_lea.vmem %s7, %s607
      $region64: #{original_mixer_forward.1} parent=39 // pred_fallthru
        _
      // Predicated region
      $region65: #{original_mixer_forward.1} parent=39 // pred_check
        %p609 = pneg %p255
      $region66: #{original_mixer_forward.1} parent=39 // pred_check_branch
        %611 = sbr.rel (%p609) target = $region68
      $region67: #{original_mixer_forward.1} parent=39 // pred_region
        %p612 = scmp.lt.s32.totalorder %s33, 1
        %s613 = scalar_select %p612, %s33, 1
        %s614 = smul.addr %s613, 2
        %s615 = smul.addr %s614, 8
        %s616 = scalar_lea.vmem %s8, %s615
      $region68: #{original_mixer_forward.1} parent=39 // pred_fallthru
        _
      // Predicated region
      $region69: #{original_mixer_forward.1} parent=39 // pred_check
        %p617 = pneg %p281
      $region70: #{original_mixer_forward.1} parent=39 // pred_check_branch
        %619 = sbr.rel (%p617) target = $region72
      $region71: #{original_mixer_forward.1} parent=39 // pred_region
        %p620 = scmp.lt.s32.totalorder %s33, 1
        %s621 = scalar_select %p620, %s33, 1
        %s622 = scalar_lea.vmem %s9, %s621
      $region72: #{original_mixer_forward.1} parent=39 // pred_fallthru
        _
      // Predicated region
      $region73: #{original_mixer_forward.1} parent=39 // pred_check
        %p623 = pneg %p307
      $region74: #{original_mixer_forward.1} parent=39 // pred_check_branch
        %625 = sbr.rel (%p623) target = $region76
      $region75: #{original_mixer_forward.1} parent=39 // pred_region
        %p626 = scmp.lt.s32.totalorder %s33, 1
        %s627 = scalar_select %p626, %s33, 1
        %s628 = scalar_lea.vmem %s10, %s627
      $region76: #{original_mixer_forward.1} parent=39 // pred_fallthru
        _
      // Predicated region
      $region77: #{original_mixer_forward.1} parent=39 // pred_check
        %p629 = pneg %p333
      $region78: #{original_mixer_forward.1} parent=39 // pred_check_branch
        %631 = sbr.rel (%p629) target = $region80
      $region79: #{original_mixer_forward.1} parent=39 // pred_region
        %p632 = scmp.lt.s32.totalorder %s33, 1
        %s633 = scalar_select %p632, %s33, 1
        %s634 = smul.addr %s633, 4
        %s635 = smul.addr %s634, 8
        %s636 = scalar_lea.vmem %s11, %s635
      $region80: #{original_mixer_forward.1} parent=39 // pred_fallthru
        _
      // Predicated region
      $region81: #{original_mixer_forward.1} parent=39 // pred_check
        %p637 = pneg %p359
      $region82: #{original_mixer_forward.1} parent=39 // pred_check_branch
        %639 = sbr.rel (%p637) target = $region84
      $region83: #{original_mixer_forward.1} parent=39 // pred_region
        %p640 = scmp.lt.s32.totalorder %s33, 1
        %s641 = scalar_select %p640, %s33, 1
        %s642 = scalar_lea.vmem %s12, %s641
      $region84: #{original_mixer_forward.1} parent=39 // pred_fallthru
        _
      // Predicated region
      $region85: #{original_mixer_forward.1} parent=39 // pred_check
        %p643 = pneg %p385
      $region86: #{original_mixer_forward.1} parent=39 // pred_check_branch
        %645 = sbr.rel (%p643) target = $region88
      $region87: #{original_mixer_forward.1} parent=39 // pred_region
        %p646 = scmp.lt.s32.totalorder %s33, 1
        %s647 = scalar_select %p646, %s33, 1
        %s648 = smul.addr %s647, 8
        %s649 = smul.addr %s648, 8
        %s650 = scalar_lea.vmem %s13, %s649
      $region88: #{original_mixer_forward.1} parent=39 // pred_fallthru
        _
      // Predicated region
      $region89: #{original_mixer_forward.1} parent=39 // pred_check
        %p651 = pneg %p411
      $region90: #{original_mixer_forward.1} parent=39 // pred_check_branch
        %653 = sbr.rel (%p651) target = $region92
      $region91: #{original_mixer_forward.1} parent=39 // pred_region
        %p654 = scmp.lt.s32.totalorder %s33, 1
        %s655 = scalar_select %p654, %s33, 1
        %s656 = scalar_lea.vmem %s14, %s655
      $region92: #{original_mixer_forward.1} parent=39 // pred_fallthru
        _
    $region40: #{original_mixer_forward.1} parent=5 // pred_fallthru
      _
    %p657 = scmp.le.s32.totalorder 1, %s25
    %p658 = scmp.lt.s32.totalorder %s25, 5
    %p659 = pnand %p657, %p658
    %p660 = pneg %p659
    // Predicated region
    $region93: #{original_mixer_forward.1} parent=5 // pred_check
      _
    $region94: #{original_mixer_forward.1} parent=5 // pred_check_branch
      %662 = sbr.rel (%p659) target = $region96
    $region95: #{original_mixer_forward.1} parent=5 // pred_region
      %s663 = ssub.s32 %s25, 1
      %s664 = smul.u32 2, %s34
      %p665 = scmp.lt.s32.totalorder %s664, 3
      %s666 = scalar_select %p665, %s664, 3
      %s667 = smul.addr %s666, 8
      %s668 = scalar_lea.vmem %s0, %s667
      %p669 = pneg %p63
      %p670 = pneg %p60
      %p671 = pneg %p84
      %p672 = pneg %p81
      %p673 = pneg %p105
      %p674 = pneg %p102
      %p675 = scmp.lt.s32.totalorder %s35, 1
      %s676 = scalar_select %p675, %s35, 1
      %s677 = scalar_lea.vmem %s3, %s676
      %p678 = pneg %p131
      %p679 = pneg %p128
      %p680 = scmp.lt.s32.totalorder %s35, 1
      %s681 = scalar_select %p680, %s35, 1
      %s682 = scalar_lea.vmem %s4, %s681
      %p683 = pneg %p157
      %p684 = pneg %p154
      %p685 = scmp.lt.s32.totalorder %s35, 1
      %s686 = scalar_select %p685, %s35, 1
      %s687 = smul.addr %s686, 2
      %s688 = smul.addr %s687, 8
      %s689 = scalar_lea.vmem %s5, %s688
      %p690 = pneg %p183
      %p691 = pneg %p180
      %p692 = scmp.lt.s32.totalorder %s35, 1
      %s693 = scalar_select %p692, %s35, 1
      %s694 = smul.addr %s693, 2
      %s695 = smul.addr %s694, 8
      %s696 = scalar_lea.vmem %s6, %s695
      %p697 = pneg %p209
      %p698 = pneg %p206
      %p699 = scmp.lt.s32.totalorder %s35, 1
      %s700 = scalar_select %p699, %s35, 1
      %s701 = smul.addr %s700, 2
      %s702 = smul.addr %s701, 8
      %s703 = scalar_lea.vmem %s7, %s702
      %p704 = pneg %p235
      %p705 = pneg %p232
      %p706 = scmp.lt.s32.totalorder %s35, 1
      %s707 = scalar_select %p706, %s35, 1
      %s708 = smul.addr %s707, 2
      %s709 = smul.addr %s708, 8
      %s710 = scalar_lea.vmem %s8, %s709
      %p711 = pneg %p261
      %p712 = pneg %p258
      %p713 = scmp.lt.s32.totalorder %s35, 1
      %s714 = scalar_select %p713, %s35, 1
      %s715 = scalar_lea.vmem %s9, %s714
      %p716 = pneg %p287
      %p717 = pneg %p284
      %p718 = scmp.lt.s32.totalorder %s35, 1
      %s719 = scalar_select %p718, %s35, 1
      %s720 = scalar_lea.vmem %s10, %s719
      %p721 = pneg %p313
      %p722 = pneg %p310
      %p723 = scmp.lt.s32.totalorder %s35, 1
      %s724 = scalar_select %p723, %s35, 1
      %s725 = smul.addr %s724, 4
      %s726 = smul.addr %s725, 8
      %s727 = scalar_lea.vmem %s11, %s726
      %p728 = pneg %p339
      %p729 = pneg %p336
      %p730 = scmp.lt.s32.totalorder %s35, 1
      %s731 = scalar_select %p730, %s35, 1
      %s732 = scalar_lea.vmem %s12, %s731
      %p733 = pneg %p365
      %p734 = pneg %p362
      %p735 = scmp.lt.s32.totalorder %s35, 1
      %s736 = scalar_select %p735, %s35, 1
      %s737 = smul.addr %s736, 8
      %s738 = smul.addr %s737, 8
      %s739 = scalar_lea.vmem %s13, %s738
      %p740 = pneg %p391
      %p741 = pneg %p388
      %p742 = scmp.lt.s32.totalorder %s35, 1
      %s743 = scalar_select %p742, %s35, 1
      %s744 = scalar_lea.vmem %s14, %s743
      %p745 = pneg %p417
      %p746 = pneg %p414
      %p747 = pneg %p438
      %p748 = pneg %p435
      %p749 = pneg %p459
      %p750 = pneg %p456
      %p751 = pneg %p480
      %p752 = pneg %p477
      %p753 = pneg %p501
      %p754 = pneg %p498
      %p755 = pneg %p527
      %p756 = pneg %p524
      %s757 = smul.u32 2, %s34
      %p758 = scmp.lt.s32.totalorder %s757, 3
      %s759 = scalar_select %p758, %s757, 3
      %s760 = smul.addr %s759, 8
      %s761 = scalar_lea.vmem %s19, %s760
      %s762 = smul.u32 2, %s34
      %p763 = scmp.lt.s32.totalorder %s762, 3
      %s764 = scalar_select %p763, %s762, 3
      %s765 = smul.addr %s764, 8
      %s766 = scalar_lea.vmem %s0, %s765
      %s767 = smul.u32 2, %s34
      %p768 = scmp.lt.s32.totalorder %s35, 1
      %s769 = scalar_select %p768, %s35, 1
      %s770 = scalar_lea.vmem %s3, %s769
      %p771 = scmp.lt.s32.totalorder %s35, 1
      %s772 = scalar_select %p771, %s35, 1
      %s773 = scalar_lea.vmem %s4, %s772
      %p774 = scmp.lt.s32.totalorder %s35, 1
      %s775 = scalar_select %p774, %s35, 1
      %s776 = smul.addr %s775, 2
      %s777 = smul.addr %s776, 8
      %s778 = scalar_lea.vmem %s5, %s777
      %p779 = scmp.lt.s32.totalorder %s35, 1
      %s780 = scalar_select %p779, %s35, 1
      %s781 = smul.addr %s780, 2
      %s782 = smul.addr %s781, 8
      %s783 = scalar_lea.vmem %s6, %s782
      %p784 = scmp.lt.s32.totalorder %s35, 1
      %s785 = scalar_select %p784, %s35, 1
      %s786 = smul.addr %s785, 2
      %s787 = smul.addr %s786, 8
      %s788 = scalar_lea.vmem %s7, %s787
      %p789 = scmp.lt.s32.totalorder %s35, 1
      %s790 = scalar_select %p789, %s35, 1
      %s791 = smul.addr %s790, 2
      %s792 = smul.addr %s791, 8
      %s793 = scalar_lea.vmem %s8, %s792
      %p794 = scmp.lt.s32.totalorder %s35, 1
      %s795 = scalar_select %p794, %s35, 1
      %s796 = scalar_lea.vmem %s9, %s795
      %p797 = scmp.lt.s32.totalorder %s35, 1
      %s798 = scalar_select %p797, %s35, 1
      %s799 = scalar_lea.vmem %s10, %s798
      %p800 = scmp.lt.s32.totalorder %s35, 1
      %s801 = scalar_select %p800, %s35, 1
      %s802 = smul.addr %s801, 4
      %s803 = smul.addr %s802, 8
      %s804 = scalar_lea.vmem %s11, %s803
      %p805 = scmp.lt.s32.totalorder %s35, 1
      %s806 = scalar_select %p805, %s35, 1
      %s807 = scalar_lea.vmem %s12, %s806
      %p808 = scmp.lt.s32.totalorder %s35, 1
      %s809 = scalar_select %p808, %s35, 1
      %s810 = smul.addr %s809, 8
      %s811 = smul.addr %s810, 8
      %s812 = scalar_lea.vmem %s13, %s811
      %p813 = scmp.lt.s32.totalorder %s35, 1
      %s814 = scalar_select %p813, %s35, 1
      %s815 = scalar_lea.vmem %s14, %s814
      %s816 = smul.u32 2, %s34
      %p817 = scmp.lt.s32.totalorder %s816, 3
      %s818 = scalar_select %p817, %s816, 3
      %s819 = smul.addr %s818, 8
      %s820 = scalar_lea.vmem %s19, %s819
      %s821 = smul.u32 2, %s34
      %p822 = scmp.eq.s32.totalorder %s35, 0
      // Predicated region
      $region97: #{original_mixer_forward.1} parent=95 // pred_check
        %p823 = pneg %p822
      $region98: #{original_mixer_forward.1} parent=95 // pred_check_branch
        %825 = sbr.rel (%p823) target = $region100
      $region99: #{original_mixer_forward.1} parent=95 // pred_region
        %v826 = vld [vmem:[%s766] sm:$0xff]
        %v827 = vld [vmem:[%s766 + $0x8] sm:$0xff]
        %v828 = vld [vmem:[%s1] sm:$0xff]
        %v829 = vld [vmem:[%s1 + $0x8] sm:$0xff]
        %v830 = vld [vmem:[%s1 + $0x10] sm:$0xff]
        %v831 = vld [vmem:[%s1 + $0x18] sm:$0xff]
        %v832 = vld [vmem:[%s1 + $0x20] sm:$0xff]
        %v833 = vld [vmem:[%s1 + $0x28] sm:$0xff]
        %v834 = vld [vmem:[%s2] sm:$0x1]
        %v836 = vlaneseq
        %v837 = vshrl.u32 %v836, 7
        %v838 = vsub.s32 0, %v837
        %v839 = vrot.slane %v834, %v838
        %vm841 = vcmask 392192
        %v843 = vsel %vm841, %v826, 0
        %v846 = vsel %vm841, %v827, 0
        %848 = vmatprep.subr.mxu0 0.0
        %849 = vmatpush1.msra.mxu0 %v828
        %850 = vmatprep.subr.mxu0 0.0
        %851 = vmatpush1.msra.mxu0 %v829
        %852 = vmatprep.subr.mxu0 0.0
        %853 = vmatpush1.msra.mxu0 %v830
        %854 = vmatprep.subr.mxu0 0.0
        %855 = vmatpush1.msra.mxu0 %v831
        %856 = vmatprep.subr.mxu0 0.0
        %857 = vmatpush1.msra.mxu0 %v832
        %858 = vmatprep.subr.mxu0 0.0
        %859 = vmatpush1.msra.mxu0 %v833
        %860 = vmatprep.subr.mxu0 0.0
        %861 = vmatpush1.msra.mxu0 0.0
        %862 = vmatprep.subr.mxu0 0.0
        %863 = vmatpush1.msra.mxu0 0.0
        %864 = vmatprep.subr.mxu0 0.0
        %865 = vmatpush1.msra.mxu0 0.0
        %866 = vmatprep.subr.mxu0 0.0
        %867 = vmatpush1.msra.mxu0 0.0
        %868 = vmatprep.subr.mxu0 0.0
        %869 = vmatpush1.msra.mxu0 0.0
        %870 = vmatprep.subr.mxu0 0.0
        %871 = vmatpush1.msra.mxu0 0.0
        %872 = vmatprep.subr.mxu0 0.0
        %873 = vmatpush1.msra.mxu0 0.0
        %874 = vmatprep.subr.mxu0 0.0
        %875 = vmatpush1.msra.mxu0 0.0
        %876 = vmatprep.subr.mxu0 0.0
        %877 = vmatpush1.msra.mxu0 0.0
        %878 = vmatprep.subr.mxu0 0.0
        %879 = vmatpush1.msra.mxu0 0.0
        %880 = vmatprep.subr.mxu0 0.0
        %881 = vmatpush1.msra.mxu0 0.0
        %882 = vmatprep.subr.mxu0 0.0
        %883 = vmatpush1.msra.mxu0 0.0
        %884 = vmatprep.subr.mxu0 0.0
        %885 = vmatpush1.msra.mxu0 0.0
        %886 = vmatprep.subr.mxu0 0.0
        %887 = vmatpush1.msra.mxu0 0.0
        %888 = vmatprep.subr.mxu0 0.0
        %889 = vmatpush1.msra.mxu0 0.0
        %890 = vmatprep.subr.mxu0 0.0
        %891 = vmatpush1.msra.mxu0 0.0
        %892 = vmatprep.subr.mxu0 0.0
        %893 = vmatpush1.msra.mxu0 0.0
        %894 = vmatprep.subr.mxu0 0.0
        %895 = vmatpush1.msra.mxu0 0.0
        %896 = vmatprep.subr.mxu0 0.0
        %897 = vmatpush1.msra.mxu0 0.0
        %898 = vmatprep.subr.mxu0 0.0
        %899 = vmatpush1.msra.mxu0 0.0
        %900 = vmatprep.subr.mxu0 0.0
        %901 = vmatpush1.msra.mxu0 0.0
        %902 = vmatprep.subr.mxu0 0.0
        %903 = vmatpush1.msra.mxu0 0.0
        %904 = vmatprep.subr.mxu0 0.0
        %905 = vmatpush1.msra.mxu0 0.0
        %906 = vmatprep.subr.mxu0 0.0
        %907 = vmatpush1.msra.mxu0 0.0
        %908 = vmatprep.subr.mxu0 0.0
        %909 = vmatpush1.msra.mxu0 0.0
        %910 = vmatprep.subr.mxu0 0.0
        %911 = vmatpush1.msra.mxu0 0.0
        %912 = vmatprep.mubr.f32.mxu0 0.0
        %913 = vmatmul.mubr.f32.gmra.mrb[0].mxu0 %v843
        %v914 = vpop.f32.mrb[0].mxu0
        %v915 = vadd.f32 %v839, %v914
        %v916 = vpop.f32.mrb[0].mxu0
        %917 = vmatprep.mubr.f32.mxu0 0.0
        %918 = vmatmul.mubr.f32.gmra.mrb[0].mxu0 %v846
        %v919 = vpop.f32.mrb[0].mxu0
        %v920 = vadd.f32 %v839, %v919
        %v921 = vpop.f32.mrb[0].mxu0
        %922 = vdwg.mxu0
        %vm923 = vcmask 261120
        %924 = vst.msk [vmem:[#allocation2] sm:$0xff] %vm923, %v915
        %925 = vst.msk [vmem:[#allocation2 + $0x8] sm:$0xff] %vm923, %v920
      $region100: #{original_mixer_forward.1} parent=95 // pred_fallthru
        _
      %v926 = vld [vmem:[#allocation2] sm:$0xff]
      %v927 = vld [vmem:[#allocation2 + $0x8] sm:$0xff]
      %v928 = vld [vmem:[%s770] sm:$0x1]
      %v929 = vld [vmem:[%s773] sm:$0x1]
      %vm930 = vcmask 261120
      %v931 = vsel %vm930, %v926, 0.0
      %932 = vadd.xlane.f32.xlu0 %v931
      %v933 = vpop.xlane.xlu0 %932
      %v934 = vsel %vm930, %v927, 0.0
      %935 = vadd.xlane.f32.xlu0 %v934
      %v936 = vpop.xlane.xlu0 %935
      %v937 = vrcp.pop 32.0
      %v938 = vmul.f32 %v933, %v937
      %v939 = vmul.f32 %v936, %v937
      %v940 = vmul.f32 %v926, %v926
      %v941 = vmul.f32 %v927, %v927
      %v942 = vsel %vm930, %v940, 0.0
      %943 = vadd.xlane.f32.xlu0 %v942
      %v944 = vpop.xlane.xlu0 %943
      %v945 = vsel %vm930, %v941, 0.0
      %946 = vadd.xlane.f32.xlu0 %v945
      %v947 = vpop.xlane.xlu0 %946
      %v948 = vmul.f32 %v944, %v937
      %v949 = vmul.f32 %v947, %v937
      %v950 = vmul.f32 %v938, %v938
      %v951 = vmul.f32 %v939, %v939
      %v952 = vsub.f32 %v948, %v950
      %v953 = vsub.f32 %v949, %v951
      %v954 = vmax.f32 %v952, 0.0
      %v955 = vmax.f32 %v953, 0.0
      %v956 = vsub.f32 %v926, %v938
      %v957 = vsub.f32 %v927, %v939
      %v958 = vadd.f32 %v954, 1e-05
      %v959 = vadd.f32 %v955, 1e-05
      %v960 = vrsqrt.pop %v958
      %v961 = vrsqrt.pop %v959
      %v962 = vmul.f32 %v956, %v960
      %v963 = vmul.f32 %v957, %v961
      %v965 = vlaneseq
      %v966 = vshrl.u32 %v965, 7
      %v967 = vsub.s32 0, %v966
      %v968 = vrot.slane %v928, %v967
      %v970 = vmul.f32 %v962, %v968
      %v971 = vmul.f32 %v963, %v968
      %v973 = vlaneseq
      %v974 = vshrl.u32 %v973, 7
      %v975 = vsub.s32 0, %v974
      %v976 = vrot.slane %v929, %v975
      %v978 = vadd.f32 %v970, %v976
      %v979 = vadd.f32 %v971, %v976
      %v980 = vld [vmem:[%s778] sm:$0xff]
      %v981 = vld [vmem:[%s778 + $0x8] sm:$0xff]
      %v982 = vld [vmem:[%s783] sm:$0xff]
      %v983 = vld [vmem:[%s783 + $0x8] sm:$0xff]
      %985 = vset.pattern.permute.xlu0 0
      %986 = vperm.xlu0 %985, %v982
      %v987 = vpop.permute.xlu0 %986
      %990 = vset.pattern.permute.xlu0 0
      %991 = vperm.xlu0 %990, %v983
      %v992 = vpop.permute.xlu0 %991
      %vm994 = vcmask 130048
      %v996 = vsel %vm994, %v980, 0
      %v999 = vsel %vm994, %v981, 0
      %1001 = vmatprep.subr.mxu0 0.0
      %1002 = vmatpush1.msra.mxu0 %v978
      %1003 = vmatprep.subr.mxu0 0.0
      %1004 = vmatpush1.msra.mxu0 %v979
      %1005 = vmatprep.subr.mxu0 0.0
      %1006 = vmatpush1.msra.mxu0 0.0
      %1007 = vmatprep.subr.mxu0 0.0
      %1008 = vmatpush1.msra.mxu0 0.0
      %1009 = vmatprep.subr.mxu0 0.0
      %1010 = vmatpush1.msra.mxu0 0.0
      %1011 = vmatprep.subr.mxu0 0.0
      %1012 = vmatpush1.msra.mxu0 0.0
      %1013 = vmatprep.subr.mxu0 0.0
      %1014 = vmatpush1.msra.mxu0 0.0
      %1015 = vmatprep.subr.mxu0 0.0
      %1016 = vmatpush1.msra.mxu0 0.0
      %1017 = vmatprep.subr.mxu0 0.0
      %1018 = vmatpush1.msra.mxu0 0.0
      %1019 = vmatprep.subr.mxu0 0.0
      %1020 = vmatpush1.msra.mxu0 0.0
      %1021 = vmatprep.subr.mxu0 0.0
      %1022 = vmatpush1.msra.mxu0 0.0
      %1023 = vmatprep.subr.mxu0 0.0
      %1024 = vmatpush1.msra.mxu0 0.0
      %1025 = vmatprep.subr.mxu0 0.0
      %1026 = vmatpush1.msra.mxu0 0.0
      %1027 = vmatprep.subr.mxu0 0.0
      %1028 = vmatpush1.msra.mxu0 0.0
      %1029 = vmatprep.subr.mxu0 0.0
      %1030 = vmatpush1.msra.mxu0 0.0
      %1031 = vmatprep.subr.mxu0 0.0
      %1032 = vmatpush1.msra.mxu0 0.0
      %1033 = vmatprep.subr.mxu0 0.0
      %1034 = vmatpush1.msra.mxu0 0.0
      %1035 = vmatprep.subr.mxu0 0.0
      %1036 = vmatpush1.msra.mxu0 0.0
      %1037 = vmatprep.subr.mxu0 0.0
      %1038 = vmatpush1.msra.mxu0 0.0
      %1039 = vmatprep.subr.mxu0 0.0
      %1040 = vmatpush1.msra.mxu0 0.0
      %1041 = vmatprep.subr.mxu0 0.0
      %1042 = vmatpush1.msra.mxu0 0.0
      %1043 = vmatprep.subr.mxu0 0.0
      %1044 = vmatpush1.msra.mxu0 0.0
      %1045 = vmatprep.subr.mxu0 0.0
      %1046 = vmatpush1.msra.mxu0 0.0
      %1047 = vmatprep.subr.mxu0 0.0
      %1048 = vmatpush1.msra.mxu0 0.0
      %1049 = vmatprep.subr.mxu0 0.0
      %1050 = vmatpush1.msra.mxu0 0.0
      %1051 = vmatprep.subr.mxu0 0.0
      %1052 = vmatpush1.msra.mxu0 0.0
      %1053 = vmatprep.subr.mxu0 0.0
      %1054 = vmatpush1.msra.mxu0 0.0
      %1055 = vmatprep.subr.mxu0 0.0
      %1056 = vmatpush1.msra.mxu0 0.0
      %1057 = vmatprep.subr.mxu0 0.0
      %1058 = vmatpush1.msra.mxu0 0.0
      %1059 = vmatprep.subr.mxu0 0.0
      %1060 = vmatpush1.msra.mxu0 0.0
      %1061 = vmatprep.subr.mxu0 0.0
      %1062 = vmatpush1.msra.mxu0 0.0
      %1063 = vmatprep.subr.mxu0 0.0
      %1064 = vmatpush1.msra.mxu0 0.0
      %1065 = vmatprep.mubr.f32.mxu0 0.0
      %1066 = vmatmul.mubr.f32.gmra.mrb[0].mxu0 %v996
      %v1067 = vpop.f32.mrb[0].mxu0
      %v1068 = vadd.f32 %v987, %v1067
      %v1069 = vpop.f32.mrb[0].mxu0
      %1070 = vmatprep.mubr.f32.mxu0 0.0
      %1071 = vmatmul.mubr.f32.gmra.mrb[0].mxu0 %v999
      %v1072 = vpop.f32.mrb[0].mxu0
      %v1073 = vadd.f32 %v992, %v1072
      %v1074 = vpop.f32.mrb[0].mxu0
      %1075 = vdwg.mxu0
      %v1076 = vmul.f32 %v1068, 0.5
      %v1077 = vmul.f32 %v1073, 0.5
      %v1078 = vmul.f32 %v1068, 0.70710677
      %v1079 = vmul.f32 %v1073, 0.70710677
      %v1080 = vand.u32 2147483647, %v1078
      %v1081 = vand.u32 2147483647, %v1079
      %v1082 = vmul.f32 %v1080, 0.3275911
      %v1083 = vmul.f32 %v1081, 0.3275911
      %v1084 = vadd.f32 %v1082, 1.0
      %v1085 = vadd.f32 %v1083, 1.0
      %v1086 = vrcp.pop %v1084
      %v1087 = vmul.f32 1.0, %v1086
      %v1088 = vrcp.pop %v1085
      %v1089 = vmul.f32 1.0, %v1088
      %v1090 = vmul.f32 %v1087, 1.0614054
      %v1091 = vmul.f32 %v1089, 1.0614054
      %v1092 = vadd.f32 %v1090, -1.4531521
      %v1093 = vadd.f32 %v1091, -1.4531521
      %v1094 = vmul.f32 %v1092, %v1087
      %v1095 = vmul.f32 %v1093, %v1089
      %v1096 = vadd.f32 %v1094, 1.4214138
      %v1097 = vadd.f32 %v1095, 1.4214138
      %v1098 = vmul.f32 %v1096, %v1087
      %v1099 = vmul.f32 %v1097, %v1089
      %v1100 = vadd.f32 %v1098, -0.28449672
      %v1101 = vadd.f32 %v1099, -0.28449672
      %v1102 = vmul.f32 %v1100, %v1087
      %v1103 = vmul.f32 %v1101, %v1089
      %v1104 = vadd.f32 %v1102, 0.2548296
      %v1105 = vadd.f32 %v1103, 0.2548296
      %v1106 = vmul.f32 %v1104, %v1087
      %v1107 = vmul.f32 %v1105, %v1089
      %v1108 = vsub.f32 0.0, %v1080
      %v1109 = vsub.f32 0.0, %v1081
      %v1110 = vmul.f32 %v1108, %v1080
      %v1111 = vmul.f32 %v1109, %v1081
      %v1112 = vmul.f32 %v1110, 1.442695
      %v1113 = vpow.pop %v1112
      %v1114 = vmul.f32 %v1111, 1.442695
      %v1115 = vpow.pop %v1114
      %v1116 = vmul.f32 %v1106, %v1113
      %v1117 = vmul.f32 %v1107, %v1115
      %v1118 = vsub.f32 1.0, %v1116
      %v1119 = vsub.f32 1.0, %v1117
      %vm1120 = vcmp.ge.f32.partialorder %v1078, 0.0
      %vm1121 = vcmp.ge.f32.partialorder %v1079, 0.0
      %v1122 = vsub.f32 0.0, %v1118
      %v1123 = vsub.f32 0.0, %v1119
      %v1124 = vsel %vm1120, %v1118, %v1122
      %v1125 = vsel %vm1121, %v1119, %v1123
      %v1126 = vadd.f32 %v1124, 1.0
      %v1127 = vadd.f32 %v1125, 1.0
      %v1128 = vmul.f32 %v1076, %v1126
      %v1129 = vmul.f32 %v1077, %v1127
      %v1130 = vld [vmem:[%s788] sm:$0xff]
      %v1131 = vld [vmem:[%s788 + $0x8] sm:$0xff]
      %v1132 = vld [vmem:[%s793] sm:$0xff]
      %v1133 = vld [vmem:[%s793 + $0x8] sm:$0xff]
      %1135 = vset.pattern.permute.xlu0 0
      %1136 = vperm.xlu0 %1135, %v1132
      %v1137 = vpop.permute.xlu0 %1136
      %1140 = vset.pattern.permute.xlu0 0
      %1141 = vperm.xlu0 %1140, %v1133
      %v1142 = vpop.permute.xlu0 %1141
      %v1145 = vsel %vm994, %v1130, 0
      %v1148 = vsel %vm994, %v1131, 0
      %1150 = vmatprep.subr.mxu0 0.0
      %1151 = vmatpush1.msra.mxu0 %v1128
      %1152 = vmatprep.subr.mxu0 0.0
      %1153 = vmatpush1.msra.mxu0 %v1129
      %1154 = vmatprep.subr.mxu0 0.0
      %1155 = vmatpush1.msra.mxu0 0.0
      %1156 = vmatprep.subr.mxu0 0.0
      %1157 = vmatpush1.msra.mxu0 0.0
      %1158 = vmatprep.subr.mxu0 0.0
      %1159 = vmatpush1.msra.mxu0 0.0
      %1160 = vmatprep.subr.mxu0 0.0
      %1161 = vmatpush1.msra.mxu0 0.0
      %1162 = vmatprep.subr.mxu0 0.0
      %1163 = vmatpush1.msra.mxu0 0.0
      %1164 = vmatprep.subr.mxu0 0.0
      %1165 = vmatpush1.msra.mxu0 0.0
      %1166 = vmatprep.subr.mxu0 0.0
      %1167 = vmatpush1.msra.mxu0 0.0
      %1168 = vmatprep.subr.mxu0 0.0
      %1169 = vmatpush1.msra.mxu0 0.0
      %1170 = vmatprep.subr.mxu0 0.0
      %1171 = vmatpush1.msra.mxu0 0.0
      %1172 = vmatprep.subr.mxu0 0.0
      %1173 = vmatpush1.msra.mxu0 0.0
      %1174 = vmatprep.subr.mxu0 0.0
      %1175 = vmatpush1.msra.mxu0 0.0
      %1176 = vmatprep.subr.mxu0 0.0
      %1177 = vmatpush1.msra.mxu0 0.0
      %1178 = vmatprep.subr.mxu0 0.0
      %1179 = vmatpush1.msra.mxu0 0.0
      %1180 = vmatprep.subr.mxu0 0.0
      %1181 = vmatpush1.msra.mxu0 0.0
      %1182 = vmatprep.subr.mxu0 0.0
      %1183 = vmatpush1.msra.mxu0 0.0
      %1184 = vmatprep.subr.mxu0 0.0
      %1185 = vmatpush1.msra.mxu0 0.0
      %1186 = vmatprep.subr.mxu0 0.0
      %1187 = vmatpush1.msra.mxu0 0.0
      %1188 = vmatprep.subr.mxu0 0.0
      %1189 = vmatpush1.msra.mxu0 0.0
      %1190 = vmatprep.subr.mxu0 0.0
      %1191 = vmatpush1.msra.mxu0 0.0
      %1192 = vmatprep.subr.mxu0 0.0
      %1193 = vmatpush1.msra.mxu0 0.0
      %1194 = vmatprep.subr.mxu0 0.0
      %1195 = vmatpush1.msra.mxu0 0.0
      %1196 = vmatprep.subr.mxu0 0.0
      %1197 = vmatpush1.msra.mxu0 0.0
      %1198 = vmatprep.subr.mxu0 0.0
      %1199 = vmatpush1.msra.mxu0 0.0
      %1200 = vmatprep.subr.mxu0 0.0
      %1201 = vmatpush1.msra.mxu0 0.0
      %1202 = vmatprep.subr.mxu0 0.0
      %1203 = vmatpush1.msra.mxu0 0.0
      %1204 = vmatprep.subr.mxu0 0.0
      %1205 = vmatpush1.msra.mxu0 0.0
      %1206 = vmatprep.subr.mxu0 0.0
      %1207 = vmatpush1.msra.mxu0 0.0
      %1208 = vmatprep.subr.mxu0 0.0
      %1209 = vmatpush1.msra.mxu0 0.0
      %1210 = vmatprep.subr.mxu0 0.0
      %1211 = vmatpush1.msra.mxu0 0.0
      %1212 = vmatprep.subr.mxu0 0.0
      %1213 = vmatpush1.msra.mxu0 0.0
      %1214 = vmatprep.mubr.f32.mxu0 0.0
      %1215 = vmatmul.mubr.f32.gmra.mrb[0].mxu0 %v1145
      %v1216 = vpop.f32.mrb[0].mxu0
      %v1217 = vadd.f32 %v1137, %v1216
      %v1218 = vpop.f32.mrb[0].mxu0
      %1219 = vmatprep.mubr.f32.mxu0 0.0
      %1220 = vmatmul.mubr.f32.gmra.mrb[0].mxu0 %v1148
      %v1221 = vpop.f32.mrb[0].mxu0
      %v1222 = vadd.f32 %v1142, %v1221
      %v1223 = vpop.f32.mrb[0].mxu0
      %1224 = vdwg.mxu0
      %v1225 = vadd.f32 %v926, %v1217
      %v1226 = vadd.f32 %v927, %v1222
      %v1227 = vld [vmem:[%s796] sm:$0x1]
      %v1228 = vld [vmem:[%s799] sm:$0x1]
      %v1229 = vsel %vm930, %v1225, 0.0
      %1230 = vadd.xlane.f32.xlu0 %v1229
      %v1231 = vpop.xlane.xlu0 %1230
      %v1232 = vsel %vm930, %v1226, 0.0
      %1233 = vadd.xlane.f32.xlu0 %v1232
      %v1234 = vpop.xlane.xlu0 %1233
      %v1235 = vmul.f32 %v1231, %v937
      %v1236 = vmul.f32 %v1234, %v937
      %v1237 = vmul.f32 %v1225, %v1225
      %v1238 = vmul.f32 %v1226, %v1226
      %v1239 = vsel %vm930, %v1237, 0.0
      %1240 = vadd.xlane.f32.xlu0 %v1239
      %v1241 = vpop.xlane.xlu0 %1240
      %v1242 = vsel %vm930, %v1238, 0.0
      %1243 = vadd.xlane.f32.xlu0 %v1242
      %v1244 = vpop.xlane.xlu0 %1243
      %v1245 = vmul.f32 %v1241, %v937
      %v1246 = vmul.f32 %v1244, %v937
      %v1247 = vmul.f32 %v1235, %v1235
      %v1248 = vmul.f32 %v1236, %v1236
      %v1249 = vsub.f32 %v1245, %v1247
      %v1250 = vsub.f32 %v1246, %v1248
      %v1251 = vmax.f32 %v1249, 0.0
      %v1252 = vmax.f32 %v1250, 0.0
      %v1253 = vsub.f32 %v1225, %v1235
      %v1254 = vsub.f32 %v1226, %v1236
      %v1255 = vadd.f32 %v1251, 1e-05
      %v1256 = vadd.f32 %v1252, 1e-05
      %v1257 = vrsqrt.pop %v1255
      %v1258 = vrsqrt.pop %v1256
      %v1259 = vmul.f32 %v1253, %v1257
      %v1260 = vmul.f32 %v1254, %v1258
      %v1262 = vlaneseq
      %v1263 = vshrl.u32 %v1262, 7
      %v1264 = vsub.s32 0, %v1263
      %v1265 = vrot.slane %v1227, %v1264
      %v1267 = vmul.f32 %v1259, %v1265
      %v1268 = vmul.f32 %v1260, %v1265
      %v1270 = vlaneseq
      %v1271 = vshrl.u32 %v1270, 7
      %v1272 = vsub.s32 0, %v1271
      %v1273 = vrot.slane %v1228, %v1272
      %v1275 = vadd.f32 %v1267, %v1273
      %v1276 = vadd.f32 %v1268, %v1273
      %v1277 = vld [vmem:[%s804] sm:$0xff]
      %v1278 = vld [vmem:[%s804 + $0x8] sm:$0xff]
      %v1279 = vld [vmem:[%s804 + $0x10] sm:$0xff]
      %v1280 = vld [vmem:[%s804 + $0x18] sm:$0xff]
      %v1281 = vld [vmem:[%s807] sm:$0x1]
      %v1283 = vlaneseq
      %v1284 = vshrl.u32 %v1283, 7
      %v1285 = vsub.s32 0, %v1284
      %v1286 = vrot.slane %v1281, %v1285
      %v1289 = vsel %vm930, %v1275, 0
      %v1292 = vsel %vm930, %v1276, 0
      %1294 = vmatprep.subr.mxu0 0.0
      %1295 = vmatpush1.msra.mxu0 %v1277
      %1296 = vmatprep.subr.mxu0 0.0
      %1297 = vmatpush1.msra.mxu0 %v1278
      %1298 = vmatprep.subr.mxu0 0.0
      %1299 = vmatpush1.msra.mxu0 %v1279
      %1300 = vmatprep.subr.mxu0 0.0
      %1301 = vmatpush1.msra.mxu0 %v1280
      %1302 = vmatprep.subr.mxu0 0.0
      %1303 = vmatpush1.msra.mxu0 0.0
      %1304 = vmatprep.subr.mxu0 0.0
      %1305 = vmatpush1.msra.mxu0 0.0
      %1306 = vmatprep.subr.mxu0 0.0
      %1307 = vmatpush1.msra.mxu0 0.0
      %1308 = vmatprep.subr.mxu0 0.0
      %1309 = vmatpush1.msra.mxu0 0.0
      %1310 = vmatprep.subr.mxu0 0.0
      %1311 = vmatpush1.msra.mxu0 0.0
      %1312 = vmatprep.subr.mxu0 0.0
      %1313 = vmatpush1.msra.mxu0 0.0
      %1314 = vmatprep.subr.mxu0 0.0
      %1315 = vmatpush1.msra.mxu0 0.0
      %1316 = vmatprep.subr.mxu0 0.0
      %1317 = vmatpush1.msra.mxu0 0.0
      %1318 = vmatprep.subr.mxu0 0.0
      %1319 = vmatpush1.msra.mxu0 0.0
      %1320 = vmatprep.subr.mxu0 0.0
      %1321 = vmatpush1.msra.mxu0 0.0
      %1322 = vmatprep.subr.mxu0 0.0
      %1323 = vmatpush1.msra.mxu0 0.0
      %1324 = vmatprep.subr.mxu0 0.0
      %1325 = vmatpush1.msra.mxu0 0.0
      %1326 = vmatprep.subr.mxu0 0.0
      %1327 = vmatpush1.msra.mxu0 0.0
      %1328 = vmatprep.subr.mxu0 0.0
      %1329 = vmatpush1.msra.mxu0 0.0
      %1330 = vmatprep.subr.mxu0 0.0
      %1331 = vmatpush1.msra.mxu0 0.0
      %1332 = vmatprep.subr.mxu0 0.0
      %1333 = vmatpush1.msra.mxu0 0.0
      %1334 = vmatprep.subr.mxu0 0.0
      %1335 = vmatpush1.msra.mxu0 0.0
      %1336 = vmatprep.subr.mxu0 0.0
      %1337 = vmatpush1.msra.mxu0 0.0
      %1338 = vmatprep.subr.mxu0 0.0
      %1339 = vmatpush1.msra.mxu0 0.0
      %1340 = vmatprep.subr.mxu0 0.0
      %1341 = vmatpush1.msra.mxu0 0.0
      %1342 = vmatprep.subr.mxu0 0.0
      %1343 = vmatpush1.msra.mxu0 0.0
      %1344 = vmatprep.subr.mxu0 0.0
      %1345 = vmatpush1.msra.mxu0 0.0
      %1346 = vmatprep.subr.mxu0 0.0
      %1347 = vmatpush1.msra.mxu0 0.0
      %1348 = vmatprep.subr.mxu0 0.0
      %1349 = vmatpush1.msra.mxu0 0.0
      %1350 = vmatprep.subr.mxu0 0.0
      %1351 = vmatpush1.msra.mxu0 0.0
      %1352 = vmatprep.subr.mxu0 0.0
      %1353 = vmatpush1.msra.mxu0 0.0
      %1354 = vmatprep.subr.mxu0 0.0
      %1355 = vmatpush1.msra.mxu0 0.0
      %1356 = vmatprep.subr.mxu0 0.0
      %1357 = vmatpush1.msra.mxu0 0.0
      %1358 = vmatprep.mubr.f32.mxu0 0.0
      %1359 = vmatmul.mubr.f32.gmra.mrb[0].mxu0 %v1289
      %v1360 = vpop.f32.mrb[0].mxu0
      %v1361 = vadd.f32 %v1286, %v1360
      %v1362 = vpop.f32.mrb[0].mxu0
      %1363 = vmatprep.mubr.f32.mxu0 0.0
      %1364 = vmatmul.mubr.f32.gmra.mrb[0].mxu0 %v1292
      %v1365 = vpop.f32.mrb[0].mxu0
      %v1366 = vadd.f32 %v1286, %v1365
      %v1367 = vpop.f32.mrb[0].mxu0
      %1368 = vdwg.mxu0
      %v1369 = vmul.f32 %v1361, 0.5
      %v1370 = vmul.f32 %v1366, 0.5
      %v1371 = vmul.f32 %v1361, 0.70710677
      %v1372 = vmul.f32 %v1366, 0.70710677
      %v1373 = vand.u32 2147483647, %v1371
      %v1374 = vand.u32 2147483647, %v1372
      %v1375 = vmul.f32 %v1373, 0.3275911
      %v1376 = vmul.f32 %v1374, 0.3275911
      %v1377 = vadd.f32 %v1375, 1.0
      %v1378 = vadd.f32 %v1376, 1.0
      %v1379 = vrcp.pop %v1377
      %v1380 = vmul.f32 1.0, %v1379
      %v1381 = vrcp.pop %v1378
      %v1382 = vmul.f32 1.0, %v1381
      %v1383 = vmul.f32 %v1380, 1.0614054
      %v1384 = vmul.f32 %v1382, 1.0614054
      %v1385 = vadd.f32 %v1383, -1.4531521
      %v1386 = vadd.f32 %v1384, -1.4531521
      %v1387 = vmul.f32 %v1385, %v1380
      %v1388 = vmul.f32 %v1386, %v1382
      %v1389 = vadd.f32 %v1387, 1.4214138
      %v1390 = vadd.f32 %v1388, 1.4214138
      %v1391 = vmul.f32 %v1389, %v1380
      %v1392 = vmul.f32 %v1390, %v1382
      %v1393 = vadd.f32 %v1391, -0.28449672
      %v1394 = vadd.f32 %v1392, -0.28449672
      %v1395 = vmul.f32 %v1393, %v1380
      %v1396 = vmul.f32 %v1394, %v1382
      %v1397 = vadd.f32 %v1395, 0.2548296
      %v1398 = vadd.f32 %v1396, 0.2548296
      %v1399 = vmul.f32 %v1397, %v1380
      %v1400 = vmul.f32 %v1398, %v1382
      %v1401 = vsub.f32 0.0, %v1373
      %v1402 = vsub.f32 0.0, %v1374
      %v1403 = vmul.f32 %v1401, %v1373
      %v1404 = vmul.f32 %v1402, %v1374
      %v1405 = vmul.f32 %v1403, 1.442695
      %v1406 = vpow.pop %v1405
      %v1407 = vmul.f32 %v1404, 1.442695
      %v1408 = vpow.pop %v1407
      %v1409 = vmul.f32 %v1399, %v1406
      %v1410 = vmul.f32 %v1400, %v1408
      %v1411 = vsub.f32 1.0, %v1409
      %v1412 = vsub.f32 1.0, %v1410
      %vm1413 = vcmp.ge.f32.partialorder %v1371, 0.0
      %vm1414 = vcmp.ge.f32.partialorder %v1372, 0.0
      %v1415 = vsub.f32 0.0, %v1411
      %v1416 = vsub.f32 0.0, %v1412
      %v1417 = vsel %vm1413, %v1411, %v1415
      %v1418 = vsel %vm1414, %v1412, %v1416
      %v1419 = vadd.f32 %v1417, 1.0
      %v1420 = vadd.f32 %v1418, 1.0
      %v1421 = vmul.f32 %v1369, %v1419
      %v1422 = vmul.f32 %v1370, %v1420
      %v1423 = vld [vmem:[%s812] sm:$0xff]
      %v1424 = vld [vmem:[%s812 + $0x8] sm:$0xff]
      %v1425 = vld [vmem:[%s812 + $0x10] sm:$0xff]
      %v1426 = vld [vmem:[%s812 + $0x18] sm:$0xff]
      %v1427 = vld [vmem:[%s812 + $0x20] sm:$0xff]
      %v1428 = vld [vmem:[%s812 + $0x28] sm:$0xff]
      %v1429 = vld [vmem:[%s812 + $0x30] sm:$0xff]
      %v1430 = vld [vmem:[%s812 + $0x38] sm:$0xff]
      %v1431 = vld [vmem:[%s815] sm:$0x1]
      %v1433 = vlaneseq
      %v1434 = vshrl.u32 %v1433, 7
      %v1435 = vsub.s32 0, %v1434
      %v1436 = vrot.slane %v1431, %v1435
      %vm1438 = vcmask 523264
      %v1440 = vsel %vm1438, %v1421, 0
      %v1443 = vsel %vm1438, %v1422, 0
      %1445 = vmatprep.subr.mxu0 0.0
      %1446 = vmatpush1.msra.mxu0 %v1423
      %1447 = vmatprep.subr.mxu0 0.0
      %1448 = vmatpush1.msra.mxu0 %v1424
      %1449 = vmatprep.subr.mxu0 0.0
      %1450 = vmatpush1.msra.mxu0 %v1425
      %1451 = vmatprep.subr.mxu0 0.0
      %1452 = vmatpush1.msra.mxu0 %v1426
      %1453 = vmatprep.subr.mxu0 0.0
      %1454 = vmatpush1.msra.mxu0 %v1427
      %1455 = vmatprep.subr.mxu0 0.0
      %1456 = vmatpush1.msra.mxu0 %v1428
      %1457 = vmatprep.subr.mxu0 0.0
      %1458 = vmatpush1.msra.mxu0 %v1429
      %1459 = vmatprep.subr.mxu0 0.0
      %1460 = vmatpush1.msra.mxu0 %v1430
      %1461 = vmatprep.subr.mxu0 0.0
      %1462 = vmatpush1.msra.mxu0 0.0
      %1463 = vmatprep.subr.mxu0 0.0
      %1464 = vmatpush1.msra.mxu0 0.0
      %1465 = vmatprep.subr.mxu0 0.0
      %1466 = vmatpush1.msra.mxu0 0.0
      %1467 = vmatprep.subr.mxu0 0.0
      %1468 = vmatpush1.msra.mxu0 0.0
      %1469 = vmatprep.subr.mxu0 0.0
      %1470 = vmatpush1.msra.mxu0 0.0
      %1471 = vmatprep.subr.mxu0 0.0
      %1472 = vmatpush1.msra.mxu0 0.0
      %1473 = vmatprep.subr.mxu0 0.0
      %1474 = vmatpush1.msra.mxu0 0.0
      %1475 = vmatprep.subr.mxu0 0.0
      %1476 = vmatpush1.msra.mxu0 0.0
      %1477 = vmatprep.subr.mxu0 0.0
      %1478 = vmatpush1.msra.mxu0 0.0
      %1479 = vmatprep.subr.mxu0 0.0
      %1480 = vmatpush1.msra.mxu0 0.0
      %1481 = vmatprep.subr.mxu0 0.0
      %1482 = vmatpush1.msra.mxu0 0.0
      %1483 = vmatprep.subr.mxu0 0.0
      %1484 = vmatpush1.msra.mxu0 0.0
      %1485 = vmatprep.subr.mxu0 0.0
      %1486 = vmatpush1.msra.mxu0 0.0
      %1487 = vmatprep.subr.mxu0 0.0
      %1488 = vmatpush1.msra.mxu0 0.0
      %1489 = vmatprep.subr.mxu0 0.0
      %1490 = vmatpush1.msra.mxu0 0.0
      %1491 = vmatprep.subr.mxu0 0.0
      %1492 = vmatpush1.msra.mxu0 0.0
      %1493 = vmatprep.subr.mxu0 0.0
      %1494 = vmatpush1.msra.mxu0 0.0
      %1495 = vmatprep.subr.mxu0 0.0
      %1496 = vmatpush1.msra.mxu0 0.0
      %1497 = vmatprep.subr.mxu0 0.0
      %1498 = vmatpush1.msra.mxu0 0.0
      %1499 = vmatprep.subr.mxu0 0.0
      %1500 = vmatpush1.msra.mxu0 0.0
      %1501 = vmatprep.subr.mxu0 0.0
      %1502 = vmatpush1.msra.mxu0 0.0
      %1503 = vmatprep.subr.mxu0 0.0
      %1504 = vmatpush1.msra.mxu0 0.0
      %1505 = vmatprep.subr.mxu0 0.0
      %1506 = vmatpush1.msra.mxu0 0.0
      %1507 = vmatprep.subr.mxu0 0.0
      %1508 = vmatpush1.msra.mxu0 0.0
      %1509 = vmatprep.mubr.f32.mxu0 0.0
      %1510 = vmatmul.mubr.f32.gmra.mrb[0].mxu0 %v1440
      %v1511 = vpop.f32.mrb[0].mxu0
      %v1512 = vadd.f32 %v1436, %v1511
      %v1513 = vpop.f32.mrb[0].mxu0
      %1514 = vmatprep.mubr.f32.mxu0 0.0
      %1515 = vmatmul.mubr.f32.gmra.mrb[0].mxu0 %v1443
      %v1516 = vpop.f32.mrb[0].mxu0
      %v1517 = vadd.f32 %v1436, %v1516
      %v1518 = vpop.f32.mrb[0].mxu0
      %1519 = vdwg.mxu0
      %v1520 = vadd.f32 %v1225, %v1512
      %v1521 = vadd.f32 %v1226, %v1517
      %1522 = vst.msk [vmem:[#allocation2] sm:$0xff] %vm930, %v1520
      %1523 = vst.msk [vmem:[#allocation2 + $0x8] sm:$0xff] %vm930, %v1521
      %p1524 = scmp.eq.s32.totalorder %s35, 1
      // Predicated region
      $region101: #{original_mixer_forward.1} parent=95 // pred_check
        %p1525 = pneg %p1524
      $region102: #{original_mixer_forward.1} parent=95 // pred_check_branch
        %1527 = sbr.rel (%p1525) target = $region104
      $region103: #{original_mixer_forward.1} parent=95 // pred_region
        %v1528 = vld [vmem:[%s15] sm:$0x1]
        %v1529 = vld [vmem:[%s16] sm:$0x1]
        %v1530 = vsel %vm930, %v1520, 0.0
        %1531 = vadd.xlane.f32.xlu0 %v1530
        %v1532 = vpop.xlane.xlu0 %1531
        %v1533 = vsel %vm930, %v1521, 0.0
        %1534 = vadd.xlane.f32.xlu0 %v1533
        %v1535 = vpop.xlane.xlu0 %1534
        %v1536 = vmul.f32 %v1532, %v937
        %v1537 = vmul.f32 %v1535, %v937
        %v1538 = vmul.f32 %v1520, %v1520
        %v1539 = vmul.f32 %v1521, %v1521
        %v1540 = vsel %vm930, %v1538, 0.0
        %1541 = vadd.xlane.f32.xlu0 %v1540
        %v1542 = vpop.xlane.xlu0 %1541
        %v1543 = vsel %vm930, %v1539, 0.0
        %1544 = vadd.xlane.f32.xlu0 %v1543
        %v1545 = vpop.xlane.xlu0 %1544
        %v1546 = vmul.f32 %v1542, %v937
        %v1547 = vmul.f32 %v1545, %v937
        %v1548 = vmul.f32 %v1536, %v1536
        %v1549 = vmul.f32 %v1537, %v1537
        %v1550 = vsub.f32 %v1546, %v1548
        %v1551 = vsub.f32 %v1547, %v1549
        %v1552 = vmax.f32 %v1550, 0.0
        %v1553 = vmax.f32 %v1551, 0.0
        %v1554 = vsub.f32 %v1520, %v1536
        %v1555 = vsub.f32 %v1521, %v1537
        %v1556 = vadd.f32 %v1552, 1e-05
        %v1557 = vadd.f32 %v1553, 1e-05
        %v1558 = vrsqrt.pop %v1556
        %v1559 = vrsqrt.pop %v1557
        %v1560 = vmul.f32 %v1554, %v1558
        %v1561 = vmul.f32 %v1555, %v1559
        %v1563 = vlaneseq
        %v1564 = vshrl.u32 %v1563, 7
        %v1565 = vsub.s32 0, %v1564
        %v1566 = vrot.slane %v1528, %v1565
        %v1568 = vmul.f32 %v1560, %v1566
        %v1569 = vmul.f32 %v1561, %v1566
        %v1571 = vlaneseq
        %v1572 = vshrl.u32 %v1571, 7
        %v1573 = vsub.s32 0, %v1572
        %v1574 = vrot.slane %v1529, %v1573
        %v1576 = vadd.f32 %v1568, %v1574
        %v1577 = vadd.f32 %v1569, %v1574
        %v1578 = vld [vmem:[%s17] sm:$0xff]
        %v1579 = vld [vmem:[%s17 + $0x8] sm:$0xff]
        %v1580 = vld [vmem:[%s17 + $0x10] sm:$0xff]
        %v1581 = vld [vmem:[%s17 + $0x18] sm:$0xff]
        %v1582 = vld [vmem:[%s18] sm:$0x1]
        %v1584 = vlaneseq
        %v1585 = vshrl.u32 %v1584, 7
        %v1586 = vsub.s32 0, %v1585
        %v1587 = vrot.slane %v1582, %v1586
        %v1590 = vsel %vm930, %v1576, 0
        %v1593 = vsel %vm930, %v1577, 0
        %1595 = vmatprep.subr.mxu0 0.0
        %1596 = vmatpush1.msra.mxu0 %v1578
        %1597 = vmatprep.subr.mxu0 0.0
        %1598 = vmatpush1.msra.mxu0 %v1579
        %1599 = vmatprep.subr.mxu0 0.0
        %1600 = vmatpush1.msra.mxu0 %v1580
        %1601 = vmatprep.subr.mxu0 0.0
        %1602 = vmatpush1.msra.mxu0 %v1581
        %1603 = vmatprep.subr.mxu0 0.0
        %1604 = vmatpush1.msra.mxu0 0.0
        %1605 = vmatprep.subr.mxu0 0.0
        %1606 = vmatpush1.msra.mxu0 0.0
        %1607 = vmatprep.subr.mxu0 0.0
        %1608 = vmatpush1.msra.mxu0 0.0
        %1609 = vmatprep.subr.mxu0 0.0
        %1610 = vmatpush1.msra.mxu0 0.0
        %1611 = vmatprep.subr.mxu0 0.0
        %1612 = vmatpush1.msra.mxu0 0.0
        %1613 = vmatprep.subr.mxu0 0.0
        %1614 = vmatpush1.msra.mxu0 0.0
        %1615 = vmatprep.subr.mxu0 0.0
        %1616 = vmatpush1.msra.mxu0 0.0
        %1617 = vmatprep.subr.mxu0 0.0
        %1618 = vmatpush1.msra.mxu0 0.0
        %1619 = vmatprep.subr.mxu0 0.0
        %1620 = vmatpush1.msra.mxu0 0.0
        %1621 = vmatprep.subr.mxu0 0.0
        %1622 = vmatpush1.msra.mxu0 0.0
        %1623 = vmatprep.subr.mxu0 0.0
        %1624 = vmatpush1.msra.mxu0 0.0
        %1625 = vmatprep.subr.mxu0 0.0
        %1626 = vmatpush1.msra.mxu0 0.0
        %1627 = vmatprep.subr.mxu0 0.0
        %1628 = vmatpush1.msra.mxu0 0.0
        %1629 = vmatprep.subr.mxu0 0.0
        %1630 = vmatpush1.msra.mxu0 0.0
        %1631 = vmatprep.subr.mxu0 0.0
        %1632 = vmatpush1.msra.mxu0 0.0
        %1633 = vmatprep.subr.mxu0 0.0
        %1634 = vmatpush1.msra.mxu0 0.0
        %1635 = vmatprep.subr.mxu0 0.0
        %1636 = vmatpush1.msra.mxu0 0.0
        %1637 = vmatprep.subr.mxu0 0.0
        %1638 = vmatpush1.msra.mxu0 0.0
        %1639 = vmatprep.subr.mxu0 0.0
        %1640 = vmatpush1.msra.mxu0 0.0
        %1641 = vmatprep.subr.mxu0 0.0
        %1642 = vmatpush1.msra.mxu0 0.0
        %1643 = vmatprep.subr.mxu0 0.0
        %1644 = vmatpush1.msra.mxu0 0.0
        %1645 = vmatprep.subr.mxu0 0.0
        %1646 = vmatpush1.msra.mxu0 0.0
        %1647 = vmatprep.subr.mxu0 0.0
        %1648 = vmatpush1.msra.mxu0 0.0
        %1649 = vmatprep.subr.mxu0 0.0
        %1650 = vmatpush1.msra.mxu0 0.0
        %1651 = vmatprep.subr.mxu0 0.0
        %1652 = vmatpush1.msra.mxu0 0.0
        %1653 = vmatprep.subr.mxu0 0.0
        %1654 = vmatpush1.msra.mxu0 0.0
        %1655 = vmatprep.subr.mxu0 0.0
        %1656 = vmatpush1.msra.mxu0 0.0
        %1657 = vmatprep.subr.mxu0 0.0
        %1658 = vmatpush1.msra.mxu0 0.0
        %1659 = vmatprep.mubr.f32.mxu0 0.0
        %1660 = vmatmul.mubr.f32.gmra.mrb[0].mxu0 %v1590
        %v1661 = vpop.f32.mrb[0].mxu0
        %v1662 = vadd.f32 %v1587, %v1661
        %v1663 = vpop.f32.mrb[0].mxu0
        %1664 = vmatprep.mubr.f32.mxu0 0.0
        %1665 = vmatmul.mubr.f32.gmra.mrb[0].mxu0 %v1593
        %v1666 = vpop.f32.mrb[0].mxu0
        %v1667 = vadd.f32 %v1587, %v1666
        %v1668 = vpop.f32.mrb[0].mxu0
        %1669 = vdwg.mxu0
        %1670 = vst [vmem:[%s820] sm:$0xff] %v1662
        %1671 = vst [vmem:[%s820 + $0x8] sm:$0xff] %v1667
      $region104: #{original_mixer_forward.1} parent=95 // pred_fallthru
        _
      %s1672 = smul.u32 2, %s34
      %p1673 = scmp.lt.s32.totalorder %s1672, 3
      %s1674 = scalar_select %p1673, %s1672, 3
      %s1675 = smul.addr %s1674, 8
      %s1676 = scalar_lea.vmem %s19, %s1675
      // Predicated region
      $region105: #{original_mixer_forward.1} parent=95 // pred_check
        %p1677 = pneg %p524
      $region106: #{original_mixer_forward.1} parent=95 // pred_check_branch
        %1679 = sbr.rel (%p1677) target = $region108
      $region107: #{original_mixer_forward.1} parent=95 // pred_region
        %s1680 = smul.u32 2, %s34
      $region108: #{original_mixer_forward.1} parent=95 // pred_fallthru
        _
    $region96: #{original_mixer_forward.1} parent=5 // pred_fallthru
      _
    %p1681 = scmp.le.s32.totalorder 2, %s25
    // Predicated region
    $region109: #{original_mixer_forward.1} parent=5 // pred_check
      %p1682 = pneg %p1681
    $region110: #{original_mixer_forward.1} parent=5 // pred_check_branch
      %1684 = sbr.rel (%p1682) target = $region112
    $region111: #{original_mixer_forward.1} parent=5 // pred_region
      %s1685 = ssub.s32 %s25, 2
      // Predicated region
      $region113: #{original_mixer_forward.1} parent=111 // pred_check
        %p1686 = pneg %p530
      $region114: #{original_mixer_forward.1} parent=111 // pred_check_branch
        %1688 = sbr.rel (%p1686) target = $region116
      $region115: #{original_mixer_forward.1} parent=111 // pred_region
        %s1689 = smul.u32 2, %s36
        %p1690 = scmp.lt.s32.totalorder %s1689, 3
        %s1691 = scalar_select %p1690, %s1689, 3
        %s1692 = smul.addr %s1691, 8
        %s1693 = scalar_lea.vmem %s19, %s1692
      $region116: #{original_mixer_forward.1} parent=111 // pred_fallthru
        _
    $region112: #{original_mixer_forward.1} parent=5 // pred_fallthru
      _
  $region6: #{original_mixer_forward.1} parent=0 // loop_footer
    %s29 = sadd.s32 1, %s25
  $region7: #{original_mixer_forward.1} parent=0 // loop_footer_branch
    %24 = sbr.rel target = $region3
  $region8: #{original_mixer_forward.1} parent=0 // loop_exit
    _

</llo_original>
